<compile_context>
chip_gen: v5e
topology: v5e:2x2
jax: 0.10.0
libtpu: 0.0.40
codegen_flags: <defaults>
</compile_context>

<pallas_src>
import functools

import jax
import jax.numpy as jnp
from jax.experimental import pallas as pl
from jax.experimental.pallas import tpu as pltpu

# ----------------------------------------------------------------------------
# Model hyper-parameters (from the PyTorch module __init__)
# ----------------------------------------------------------------------------
BERT_DIM = 768
EMB_DIM = 32
CAT_VOCAB_SIZES = [10000, 10000]
HIER_VOCAB_SIZES = [10000] * 6
HIDDEN1 = 512
HIDDEN2 = 256
NUM_CLASSES = 10          # stand-in for len(master_label_encoder.classes_)
BN_EPS = 1e-5

# bert(768) + cat(64) + hier(192) = 1024 exactly -> lane-aligned MXU K-dim.
MXU_IN = BERT_DIM + EMB_DIM * (len(CAT_VOCAB_SIZES) + len(HIER_VOCAB_SIZES))   # 1024
TOTAL_IN = MXU_IN + 1     # 1025 (the trailing `amount` scalar column)
C_PAD = 128               # pad num_classes -> 128 for a lane-dense output
TB_CAP = 512              # batch-tile cap (review: 512-1024; 512 keeps blocks small)
ROW_ALIGN = 16            # bf16 sublane packing -> 16-row alignment


def _round_up(x, m):
    return -(-x // m) * m


# ----------------------------------------------------------------------------
# Pallas kernel: fused fc1(+BN1 folded) -> ReLU -> fc2(+BN2 folded) -> ReLU -> fc3
# ----------------------------------------------------------------------------
def _mlp_kernel(x_ref, amt_ref,
                w1_ref, w1a_ref, b1_ref,
                w2_ref, b2_ref,
                w3_ref, b3_ref,
                o_ref):
    # fc1 (BN1 pre-folded into w1/b1): bf16 x straight into the MXU, f32 accum,
    # plus the rank-1 `amount` column handled on the VPU in f32, then ReLU.
    h = jnp.dot(x_ref[...], w1_ref[...], preferred_element_type=jnp.float32)
    h = h + amt_ref[...] * w1a_ref[...] + b1_ref[...]        # f32 VPU math
    h = jnp.maximum(h, 0.0)

    # fc2 (BN2 pre-folded) + ReLU.
    h = jnp.dot(h.astype(jnp.bfloat16), w2_ref[...],
                preferred_element_type=jnp.float32) + b2_ref[...]
    h = jnp.maximum(h, 0.0)

    # fc3 -> lane-dense padded logits.
    o_ref[...] = jnp.dot(h.astype(jnp.bfloat16), w3_ref[...],
                         preferred_element_type=jnp.float32) + b3_ref[...]


def mlp_pallas(x, amount, params, batch, tb_cap=TB_CAP):
    """x: (B, 1024) bf16, amount: (B, 1) f32; returns (B, C_PAD) f32 logits."""
    # Batch tiling. Rows 16-aligned (bf16). If the batch needs more than one
    # tile but at most two, split into exactly 2 grid steps so the "parallel"
    # batch axis can be sharded across v7x's two TensorCores.
    b_al = _round_up(batch, ROW_ALIGN)
    if b_al <= tb_cap:
        tb = b_al
    elif b_al <= 2 * tb_cap:
        tb = _round_up(-(-b_al // 2), ROW_ALIGN)    # 2 grid steps
    else:
        tb = tb_cap
    b_pad = _round_up(b_al, tb)
    if b_pad != batch:
        x = jnp.pad(x, ((0, b_pad - batch), (0, 0)))
        amount = jnp.pad(amount, ((0, b_pad - batch), (0, 0)))

    w1, w1a, b1 = params["w1"], params["w1a"], params["b1"]
    w2, b2 = params["w2"], params["b2"]
    w3, b3 = params["w3p"], params["b3p"]

    row_map = lambda i: (i, 0)      # batch-tiled activations
    fixed_map = lambda i: (0, 0)    # weights stay resident across grid steps

    in_specs = [
        pl.BlockSpec((tb, MXU_IN), row_map),           # x (bf16)
        pl.BlockSpec((tb, 1), row_map),                # amount (f32)
        pl.BlockSpec((MXU_IN, HIDDEN1), fixed_map),    # w1  (bf16, BN folded)
        pl.BlockSpec((1, HIDDEN1), fixed_map),         # w1 amount row (f32)
        pl.BlockSpec((1, HIDDEN1), fixed_map),         # b1  (BN folded)
        pl.BlockSpec((HIDDEN1, HIDDEN2), fixed_map),   # w2  (bf16, BN folded)
        pl.BlockSpec((1, HIDDEN2), fixed_map),         # b2  (BN folded)
        pl.BlockSpec((HIDDEN2, C_PAD), fixed_map),     # w3  (bf16, col-padded)
        pl.BlockSpec((1, C_PAD), fixed_map),           # b3  (col-padded)
    ]
    out_spec = pl.BlockSpec((tb, C_PAD), row_map)

    flops = 2 * b_pad * (MXU_IN * HIDDEN1 + HIDDEN1 * HIDDEN2 + HIDDEN2 * C_PAD)
    bytes_accessed = (
        x.size * 2 + amount.size * 4 + b_pad * C_PAD * 4
        + (w1.size + w2.size + w3.size) * 2
        + (w1a.size + b1.size + b2.size + b3.size) * 4
    )

    logits = pl.pallas_call(
        _mlp_kernel,
        out_shape=jax.ShapeDtypeStruct((b_pad, C_PAD), jnp.float32),
        grid_spec=pltpu.PrefetchScalarGridSpec(
            num_scalar_prefetch=0,
            grid=(b_pad // tb,),
            in_specs=in_specs,
            out_specs=out_spec,
        ),
        compiler_params=pltpu.CompilerParams(
            dimension_semantics=("parallel",),
            vmem_limit_bytes=32 * 1024 * 1024,   # headroom for TB=512; safe on all gens
        ),
        cost_estimate=pl.CostEstimate(
            flops=flops, transcendentals=0, bytes_accessed=bytes_accessed),
    )(x, amount, w1, w1a, b1, w2, b2, w3, b3)

    return logits[:batch]


# ----------------------------------------------------------------------------
# Full forward (glue in JAX + Pallas MLP)
# ----------------------------------------------------------------------------
@functools.partial(jax.jit, static_argnames=("batch", "tb_cap"))
def hierarchical_category_forward(bert_cls, cat_features, hier_features, amount,
                                  params, batch, tb_cap=TB_CAP):
    # Embedding lookups + concat (glue). Tables are bf16 and bert_cls is cast
    # once, so the (B, 1024) intermediate is bf16 -> half the concat writeback
    # and half the kernel's x DMA.
    # TODO(synk): a further step would fuse these gathers into the kernel via
    # scalar-prefetched index arrays + resident bf16 tables (removes the
    # (B,1024) HBM round trip entirely); left as XLA glue here.
    cat_emb = jnp.concatenate(
        [params["cat_tables"][i][cat_features[:, i]] for i in range(len(CAT_VOCAB_SIZES))],
        axis=1)
    hier_emb = jnp.concatenate(
        [params["hier_tables"][i][hier_features[:, i]] for i in range(len(HIER_VOCAB_SIZES))],
        axis=1)
    x = jnp.concatenate([bert_cls.astype(jnp.bfloat16), cat_emb, hier_emb],
                        axis=1)                                  # (B, 1024) bf16

    logits_pad = mlp_pallas(x, amount, params, batch, tb_cap)    # (B, C_PAD)
    return logits_pad[:, :NUM_CLASSES]


# ----------------------------------------------------------------------------
# Parameters: raw (PyTorch-style) init, then one-time fold/pack for the kernel
# ----------------------------------------------------------------------------
def init_raw_params(key):
    """Parameters in the original module's semantics (f32, unfolded BatchNorm).
    Linear weights are stored as (in_features, out_features) = PyTorch weight.T."""
    ks = jax.random.split(key, 22)
    p = {}
    p["cat_tables"] = [0.02 * jax.random.normal(ks[i], (v, EMB_DIM), jnp.float32)
                       for i, v in enumerate(CAT_VOCAB_SIZES)]
    p["hier_tables"] = [0.02 * jax.random.normal(ks[2 + i], (v, EMB_DIM), jnp.float32)
                        for i, v in enumerate(HIER_VOCAB_SIZES)]

    p["w1"] = 0.02 * jax.random.normal(ks[8], (TOTAL_IN, HIDDEN1), jnp.float32)
    p["b1"] = 0.01 * jax.random.normal(ks[9], (HIDDEN1,), jnp.float32)
    p["w2"] = 0.02 * jax.random.normal(ks[10], (HIDDEN1, HIDDEN2), jnp.float32)
    p["b2"] = 0.01 * jax.random.normal(ks[11], (HIDDEN2,), jnp.float32)
    p["w3"] = 0.02 * jax.random.normal(ks[12], (HIDDEN2, NUM_CLASSES), jnp.float32)
    p["b3"] = 0.01 * jax.random.normal(ks[13], (NUM_CLASSES,), jnp.float32)

    # BatchNorm1d eval-mode parameters: non-trivial values so the fold is exercised.
    p["g1"] = 1.0 + 0.1 * jax.random.normal(ks[14], (HIDDEN1,), jnp.float32)
    p["be1"] = 0.05 * jax.random.normal(ks[15], (HIDDEN1,), jnp.float32)
    p["m1"] = 0.05 * jax.random.normal(ks[16], (HIDDEN1,), jnp.float32)
    p["v1"] = 0.5 + jax.random.uniform(ks[17], (HIDDEN1,), jnp.float32)
    p["g2"] = 1.0 + 0.1 * jax.random.normal(ks[18], (HIDDEN2,), jnp.float32)
    p["be2"] = 0.05 * jax.random.normal(ks[19], (HIDDEN2,), jnp.float32)
    p["m2"] = 0.05 * jax.random.normal(ks[20], (HIDDEN2,), jnp.float32)
    p["v2"] = 0.5 + jax.random.uniform(ks[21], (HIDDEN2,), jnp.float32)
    return p


def fold_params(raw):
    """One-time parameter transform for the kernel:
    fold eval-mode BatchNorm into the Linear weights/biases, split off the
    `amount` row of fc1, pad fc3 columns to 128, cast MXU weights and the
    embedding tables to bf16 (activations are bf16 end-to-end)."""
    p = {
        "cat_tables": [t.astype(jnp.bfloat16) for t in raw["cat_tables"]],
        "hier_tables": [t.astype(jnp.bfloat16) for t in raw["hier_tables"]],
    }

    s1 = raw["g1"] / jnp.sqrt(raw["v1"] + BN_EPS)                # (H1,)
    w1f = raw["w1"] * s1[None, :]                                 # (1025, H1)
    b1f = (raw["b1"] - raw["m1"]) * s1 + raw["be1"]               # (H1,)
    p["w1"] = w1f[:MXU_IN, :].astype(jnp.bfloat16)                # (1024, H1) bf16
    p["w1a"] = w1f[MXU_IN:, :]                                    # (1, H1) f32: amount row
    p["b1"] = b1f[None, :]                                        # (1, H1) f32

    s2 = raw["g2"] / jnp.sqrt(raw["v2"] + BN_EPS)
    p["w2"] = (raw["w2"] * s2[None, :]).astype(jnp.bfloat16)      # (H1, H2) bf16
    p["b2"] = ((raw["b2"] - raw["m2"]) * s2 + raw["be2"])[None, :]

    # TODO(synk): int8 (v5e/v6e) or fp8 (v7x) weight storage would further cut
    # MXU time / weight DMA but needs an accuracy gate; not applied here.
    p["w3p"] = jnp.pad(raw["w3"],
                       ((0, 0), (0, C_PAD - NUM_CLASSES))).astype(jnp.bfloat16)
    p["b3p"] = jnp.pad(raw["b3"][None, :], ((0, 0), (0, C_PAD - NUM_CLASSES)))
    return p


# ----------------------------------------------------------------------------
# Pure-JAX references for correctness checks
# ----------------------------------------------------------------------------
def reference_forward_folded(bert_cls, cat_features, hier_features, amount, params):
    """Same folded bf16 params and math path as the kernel (tight check)."""
    cat_emb = jnp.concatenate(
        [params["cat_tables"][i][cat_features[:, i]] for i in range(len(CAT_VOCAB_SIZES))], axis=1)
    hier_emb = jnp.concatenate(
        [params["hier_tables"][i][hier_features[:, i]] for i in range(len(HIER_VOCAB_SIZES))], axis=1)
    x = jnp.concatenate([bert_cls.astype(jnp.bfloat16), cat_emb, hier_emb], axis=1)
    h = jnp.dot(x, params["w1"], preferred_element_type=jnp.float32)
    h = h + amount * params["w1a"] + params["b1"]
    h = jnp.maximum(h, 0.0)
    h = jnp.dot(h.astype(jnp.bfloat16), params["w2"],
                preferred_element_type=jnp.float32) + params["b2"]
    h = jnp.maximum(h, 0.0)
    out = jnp.dot(h.astype(jnp.bfloat16), params["w3p"],
                  preferred_element_type=jnp.float32) + params["b3p"]
    return out[:, :NUM_CLASSES]


def reference_forward_raw(bert_cls, cat_features, hier_features, amount, raw):
    """Original (unfolded, f32) BatchNorm formulation — semantics check."""
    cat_emb = jnp.concatenate(
        [raw["cat_tables"][i][cat_features[:, i]] for i in range(len(CAT_VOCAB_SIZES))], axis=1)
    hier_emb = jnp.concatenate(
        [raw["hier_tables"][i][hier_features[:, i]] for i in range(len(HIER_VOCAB_SIZES))], axis=1)
    combined = jnp.concatenate([bert_cls, cat_emb, hier_emb, amount], axis=1)   # (B, 1025)
    h = combined @ raw["w1"] + raw["b1"]
    h = (h - raw["m1"]) * raw["g1"] / jnp.sqrt(raw["v1"] + BN_EPS) + raw["be1"]
    h = jnp.maximum(h, 0.0)
    h = h @ raw["w2"] + raw["b2"]
    h = (h - raw["m2"]) * raw["g2"] / jnp.sqrt(raw["v2"] + BN_EPS) + raw["be2"]
    h = jnp.maximum(h, 0.0)
    return h @ raw["w3"] + raw["b3"]


# ----------------------------------------------------------------------------
if __name__ == "__main__":
    B = 8
    SEQ = 16  # only used by the (stubbed) BERT front end

    key = jax.random.PRNGKey(0)
    k_par, k_ids, k_cls, k_cat, k_hier, k_amt = jax.random.split(key, 6)

    raw = init_raw_params(k_par)
    params = fold_params(raw)   # one-time: BN fold + bf16 weights/tables + amount-row split

    # TODO(synk): the DistilBERT encoder has no clean single-kernel Pallas
    # equivalent here; the CLS embedding bert_out.last_hidden_state[:, 0, :]
    # is modeled as a deterministic (B, 768) input tensor instead.
    input_ids = jax.random.randint(k_ids, (B, SEQ), 0, 30522, dtype=jnp.int32)   # unused by stub
    attention_mask = jnp.ones((B, SEQ), dtype=jnp.int32)                          # unused by stub
    bert_cls = jax.random.normal(k_cls, (B, BERT_DIM), jnp.float32)

    cat_features = jax.random.randint(k_cat, (B, len(CAT_VOCAB_SIZES)), 0, 10000, dtype=jnp.int32)
    hier_features = jax.random.randint(k_hier, (B, len(HIER_VOCAB_SIZES)), 0, 10000, dtype=jnp.int32)
    amount = jax.random.normal(k_amt, (B, 1), jnp.float32)

    logits = hierarchical_category_forward(bert_cls, cat_features, hier_features,
                                           amount, params, B)
    logits = jax.block_until_ready(logits)
    assert logits.shape == (B, NUM_CLASSES), logits.shape

    # Tight check: same folded bf16 params, same math path as the kernel.
    ref_folded = reference_forward_folded(bert_cls, cat_features, hier_features, amount, params)
    assert jnp.allclose(logits, ref_folded, atol=2e-3, rtol=2e-3), \
        f"mismatch vs folded ref: {jnp.max(jnp.abs(logits - ref_folded))}"

    # Semantics check: original (unfolded, f32) BatchNorm formulation; loose
    # tolerance accounts for the bf16 weight/activation quantization.
    ref_raw = reference_forward_raw(bert_cls, cat_features, hier_features, amount, raw)
    assert jnp.allclose(logits, ref_raw, atol=5e-2, rtol=5e-2), \
        f"mismatch vs raw ref: {jnp.max(jnp.abs(logits - ref_raw))}"

    # Multi-tile / padded-batch check: batch not a multiple of the tile, small
    # forced tile cap -> multi-step grid, padded rows, and the [:batch] slice.
    B2 = 40
    k2_cls, k2_cat, k2_hier, k2_amt = jax.random.split(jax.random.PRNGKey(1), 4)
    bert_cls2 = jax.random.normal(k2_cls, (B2, BERT_DIM), jnp.float32)
    cat2 = jax.random.randint(k2_cat, (B2, len(CAT_VOCAB_SIZES)), 0, 10000, dtype=jnp.int32)
    hier2 = jax.random.randint(k2_hier, (B2, len(HIER_VOCAB_SIZES)), 0, 10000, dtype=jnp.int32)
    amount2 = jax.random.normal(k2_amt, (B2, 1), jnp.float32)
    logits2 = hierarchical_category_forward(bert_cls2, cat2, hier2, amount2,
                                            params, B2, tb_cap=16)
    logits2 = jax.block_until_ready(logits2)
    assert logits2.shape == (B2, NUM_CLASSES), logits2.shape
    ref2 = reference_forward_folded(bert_cls2, cat2, hier2, amount2, params)
    assert jnp.allclose(logits2, ref2, atol=2e-3, rtol=2e-3), \
        f"multi-tile mismatch vs folded ref: {jnp.max(jnp.abs(logits2 - ref2))}"

    print("KERNEL_OK")
</pallas_src>

<mosaic_0001>
module attributes {stable_mosaic.version = 11 : i64} {
  func.func @_mlp_kernel(%arg0: i32, %arg1: memref<16x1024xbf16, #tpu.memory_space<vmem>>, %arg2: memref<16x1xf32, #tpu.memory_space<vmem>>, %arg3: memref<1024x512xbf16, #tpu.memory_space<vmem>>, %arg4: memref<1x512xf32, #tpu.memory_space<vmem>>, %arg5: memref<1x512xf32, #tpu.memory_space<vmem>>, %arg6: memref<512x256xbf16, #tpu.memory_space<vmem>>, %arg7: memref<1x256xf32, #tpu.memory_space<vmem>>, %arg8: memref<256x128xbf16, #tpu.memory_space<vmem>>, %arg9: memref<1x128xf32, #tpu.memory_space<vmem>>, %arg10: memref<16x128xf32, #tpu.memory_space<vmem>>) attributes {dimension_semantics = [#tpu.dimension_semantics<parallel>], iteration_bounds = array<i64: 1>, scalar_prefetch = 0 : i64, scratch_operands = 0 : i64, tpu.core_type = #tpu.core_type<tc>, window_params = [{transform_indices = @transform_0, window_bounds = array<i64: 16, 1024>}, {transform_indices = @transform_1, window_bounds = array<i64: 16, 1>}, {pipeline_mode = #tpu.pipeline_mode<synchronous>, transform_indices = @transform_2, window_bounds = array<i64: 1024, 512>}, {pipeline_mode = #tpu.pipeline_mode<synchronous>, transform_indices = @transform_3, window_bounds = array<i64: 1, 512>}, {pipeline_mode = #tpu.pipeline_mode<synchronous>, transform_indices = @transform_4, window_bounds = array<i64: 1, 512>}, {pipeline_mode = #tpu.pipeline_mode<synchronous>, transform_indices = @transform_5, window_bounds = array<i64: 512, 256>}, {pipeline_mode = #tpu.pipeline_mode<synchronous>, transform_indices = @transform_6, window_bounds = array<i64: 1, 256>}, {pipeline_mode = #tpu.pipeline_mode<synchronous>, transform_indices = @transform_7, window_bounds = array<i64: 256, 128>}, {pipeline_mode = #tpu.pipeline_mode<synchronous>, transform_indices = @transform_8, window_bounds = array<i64: 1, 128>}, {transform_indices = @transform_9, window_bounds = array<i64: 16, 128>}]} {
    %c0 = arith.constant 0 : index
    %c0_0 = arith.constant 0 : index
    %0 = vector.load %arg1[%c0, %c0_0] : memref<16x1024xbf16, #tpu.memory_space<vmem>>, vector<16x1024xbf16>
    %c0_1 = arith.constant 0 : index
    %c0_2 = arith.constant 0 : index
    %1 = vector.load %arg3[%c0_1, %c0_2] : memref<1024x512xbf16, #tpu.memory_space<vmem>>, vector<1024x512xbf16>
    %cst = arith.constant dense<0.000000e+00> : vector<16x512xf32>
    %2 = tpu.matmul %0, %1, %cst {dimension_numbers = #tpu.dot_dimension_numbers<[1], [0], [0], [1], [0, 0, 1, 1], [], []>} : vector<16x1024xbf16>, vector<1024x512xbf16>, vector<16x512xf32> -> vector<16x512xf32>
    %c0_3 = arith.constant 0 : index
    %c0_4 = arith.constant 0 : index
    %3 = vector.load %arg2[%c0_3, %c0_4] : memref<16x1xf32, #tpu.memory_space<vmem>>, vector<16x1xf32>
    %c0_5 = arith.constant 0 : index
    %c0_6 = arith.constant 0 : index
    %4 = vector.load %arg4[%c0_5, %c0_6] : memref<1x512xf32, #tpu.memory_space<vmem>>, vector<1x512xf32>
    %5 = vector.broadcast %3 : vector<16x1xf32> to vector<16x512xf32>
    %6 = vector.broadcast %4 : vector<1x512xf32> to vector<16x512xf32>
    %7 = arith.mulf %5, %6 : vector<16x512xf32>
    %8 = arith.addf %2, %7 : vector<16x512xf32>
    %c0_7 = arith.constant 0 : index
    %c0_8 = arith.constant 0 : index
    %9 = vector.load %arg5[%c0_7, %c0_8] : memref<1x512xf32, #tpu.memory_space<vmem>>, vector<1x512xf32>
    %10 = vector.broadcast %9 : vector<1x512xf32> to vector<16x512xf32>
    %11 = arith.addf %8, %10 : vector<16x512xf32>
    %cst_9 = arith.constant 0.000000e+00 : f32
    %12 = vector.broadcast %cst_9 : f32 to vector<16x512xf32>
    %13 = arith.maximumf %11, %12 : vector<16x512xf32>
    %14 = arith.truncf %13 : vector<16x512xf32> to vector<16x512xbf16>
    %c0_10 = arith.constant 0 : index
    %c0_11 = arith.constant 0 : index
    %15 = vector.load %arg6[%c0_10, %c0_11] : memref<512x256xbf16, #tpu.memory_space<vmem>>, vector<512x256xbf16>
    %cst_12 = arith.constant dense<0.000000e+00> : vector<16x256xf32>
    %16 = tpu.matmul %14, %15, %cst_12 {dimension_numbers = #tpu.dot_dimension_numbers<[1], [0], [0], [1], [0, 0, 1, 1], [], []>} : vector<16x512xbf16>, vector<512x256xbf16>, vector<16x256xf32> -> vector<16x256xf32>
    %c0_13 = arith.constant 0 : index
    %c0_14 = arith.constant 0 : index
    %17 = vector.load %arg7[%c0_13, %c0_14] : memref<1x256xf32, #tpu.memory_space<vmem>>, vector<1x256xf32>
    %18 = vector.broadcast %17 : vector<1x256xf32> to vector<16x256xf32>
    %19 = arith.addf %16, %18 : vector<16x256xf32>
    %cst_15 = arith.constant 0.000000e+00 : f32
    %20 = vector.broadcast %cst_15 : f32 to vector<16x256xf32>
    %21 = arith.maximumf %19, %20 : vector<16x256xf32>
    %22 = arith.truncf %21 : vector<16x256xf32> to vector<16x256xbf16>
    %c0_16 = arith.constant 0 : index
    %c0_17 = arith.constant 0 : index
    %23 = vector.load %arg8[%c0_16, %c0_17] : memref<256x128xbf16, #tpu.memory_space<vmem>>, vector<256x128xbf16>
    %cst_18 = arith.constant dense<0.000000e+00> : vector<16x128xf32>
    %24 = tpu.matmul %22, %23, %cst_18 {dimension_numbers = #tpu.dot_dimension_numbers<[1], [0], [0], [1], [0, 0, 1, 1], [], []>} : vector<16x256xbf16>, vector<256x128xbf16>, vector<16x128xf32> -> vector<16x128xf32>
    %c0_19 = arith.constant 0 : index
    %c0_20 = arith.constant 0 : index
    %25 = vector.load %arg9[%c0_19, %c0_20] : memref<1x128xf32, #tpu.memory_space<vmem>>, vector<1x128xf32>
    %26 = vector.broadcast %25 : vector<1x128xf32> to vector<16x128xf32>
    %27 = arith.addf %24, %26 : vector<16x128xf32>
    %c0_21 = arith.constant 0 : index
    %c0_22 = arith.constant 0 : index
    %28 = vector.load %arg10[%c0_21, %c0_22] : memref<16x128xf32, #tpu.memory_space<vmem>>, vector<16x128xf32>
    tpu.vector_store %arg10[%c0_21, %c0_22], %27 {strides = array<i32>} : memref<16x128xf32, #tpu.memory_space<vmem>>, vector<16x128xf32>,
    return
  }
  func.func @transform_0(%arg0: i32) -> (i32, i32) {
    %c0_i32 = arith.constant 0 : i32
    %c0_i32_0 = arith.constant 0 : i32
    return %arg0, %c0_i32 : i32, i32
  }
  func.func @transform_1(%arg0: i32) -> (i32, i32) {
    %c0_i32 = arith.constant 0 : i32
    %c0_i32_0 = arith.constant 0 : i32
    return %arg0, %c0_i32 : i32, i32
  }
  func.func @transform_2(%arg0: i32) -> (i32, i32) {
    %c0_i32 = arith.constant 0 : i32
    %c0_i32_0 = arith.constant 0 : i32
    %c0_i32_1 = arith.constant 0 : i32
    return %c0_i32, %c0_i32_0 : i32, i32
  }
  func.func @transform_3(%arg0: i32) -> (i32, i32) {
    %c0_i32 = arith.constant 0 : i32
    %c0_i32_0 = arith.constant 0 : i32
    %c0_i32_1 = arith.constant 0 : i32
    return %c0_i32, %c0_i32_0 : i32, i32
  }
  func.func @transform_4(%arg0: i32) -> (i32, i32) {
    %c0_i32 = arith.constant 0 : i32
    %c0_i32_0 = arith.constant 0 : i32
    %c0_i32_1 = arith.constant 0 : i32
    return %c0_i32, %c0_i32_0 : i32, i32
  }
  func.func @transform_5(%arg0: i32) -> (i32, i32) {
    %c0_i32 = arith.constant 0 : i32
    %c0_i32_0 = arith.constant 0 : i32
    %c0_i32_1 = arith.constant 0 : i32
    return %c0_i32, %c0_i32_0 : i32, i32
  }
  func.func @transform_6(%arg0: i32) -> (i32, i32) {
    %c0_i32 = arith.constant 0 : i32
    %c0_i32_0 = arith.constant 0 : i32
    %c0_i32_1 = arith.constant 0 : i32
    return %c0_i32, %c0_i32_0 : i32, i32
  }
  func.func @transform_7(%arg0: i32) -> (i32, i32) {
    %c0_i32 = arith.constant 0 : i32
    %c0_i32_0 = arith.constant 0 : i32
    %c0_i32_1 = arith.constant 0 : i32
    return %c0_i32, %c0_i32_0 : i32, i32
  }
  func.func @transform_8(%arg0: i32) -> (i32, i32) {
    %c0_i32 = arith.constant 0 : i32
    %c0_i32_0 = arith.constant 0 : i32
    %c0_i32_1 = arith.constant 0 : i32
    return %c0_i32, %c0_i32_0 : i32, i32
  }
  func.func @transform_9(%arg0: i32) -> (i32, i32) {
    %c0_i32 = arith.constant 0 : i32
    %c0_i32_0 = arith.constant 0 : i32
    return %arg0, %c0_i32 : i32, i32
  }
}

</mosaic_0001>

<llo_original>
// kernel: hierarchical_category_forward.1
$region0: #{hierarchical_category_forward.1}
  #allocation0 [shape = 'u32[]', space=smem, size = 0x4, offset = 0x4, fixed_abs, tag = 'smem constant byte address 0x4 - core index']
  #allocation1 [shape = 'u32[72,128]{1,0:T(1,128)}', space=vmem, size = 0x9000, scoped, tag = 'internal scratch']
  %s0 = inlined_call_operand.vmem [shape: bf16[16,1024], index: 0, kind: input, shape index: {}]
  %s1 = inlined_call_operand.vmem [shape: f32[16,1], index: 1, kind: input, shape index: {}]
  %s2 = inlined_call_operand.vmem [shape: bf16[1024,512], index: 2, kind: input, shape index: {}]
  %s3 = inlined_call_operand.vmem [shape: f32[1,512], index: 3, kind: input, shape index: {}]
  %s4 = inlined_call_operand.vmem [shape: f32[1,512], index: 4, kind: input, shape index: {}]
  %s5 = inlined_call_operand.vmem [shape: bf16[512,256], index: 5, kind: input, shape index: {}]
  %s6 = inlined_call_operand.vmem [shape: f32[1,256], index: 6, kind: input, shape index: {}]
  %s7 = inlined_call_operand.vmem [shape: bf16[256,128], index: 7, kind: input, shape index: {}]
  %s8 = inlined_call_operand.vmem [shape: f32[1,128], index: 8, kind: input, shape index: {}]
  %s9 = inlined_call_operand.vmem [shape: f32[16,128], index: 9, kind: output, shape index: {}]
  %s10 = sld [smem:[#allocation0]]
  $region46: #{hierarchical_category_forward.1} parent=0
    _
  %s12 = ssub.s32 1, %s10
  %s13 = scalar_select 0, %s12, %s10
  // Predicated region
  $region2: #{hierarchical_category_forward.1} parent=0 // pred_check
    _
  $region3: #{hierarchical_category_forward.1} parent=0 // pred_check_branch
    %15 = sbr.rel (0) target = $region5
  $region4: #{hierarchical_category_forward.1} parent=0 // pred_region
    _
  $region5: #{hierarchical_category_forward.1} parent=0 // pred_fallthru
    _
  // Predicated region
  $region6: #{hierarchical_category_forward.1} parent=0 // pred_check
    _
  $region7: #{hierarchical_category_forward.1} parent=0 // pred_check_branch
    %17 = sbr.rel (0) target = $region9
  $region8: #{hierarchical_category_forward.1} parent=0 // pred_region
    _
  $region9: #{hierarchical_category_forward.1} parent=0 // pred_fallthru
    _
  // Predicated region
  $region10: #{hierarchical_category_forward.1} parent=0 // pred_check
    _
  $region11: #{hierarchical_category_forward.1} parent=0 // pred_check_branch
    %19 = sbr.rel (0) target = $region13
  $region12: #{hierarchical_category_forward.1} parent=0 // pred_region
    _
  $region13: #{hierarchical_category_forward.1} parent=0 // pred_fallthru
    _
  // Predicated region
  $region14: #{hierarchical_category_forward.1} parent=0 // pred_check
    _
  $region15: #{hierarchical_category_forward.1} parent=0 // pred_check_branch
    %21 = sbr.rel (0) target = $region17
  $region16: #{hierarchical_category_forward.1} parent=0 // pred_region
    _
  $region17: #{hierarchical_category_forward.1} parent=0 // pred_fallthru
    _
  // Predicated region
  $region18: #{hierarchical_category_forward.1} parent=0 // pred_check
    _
  $region19: #{hierarchical_category_forward.1} parent=0 // pred_check_branch
    %23 = sbr.rel (0) target = $region21
  $region20: #{hierarchical_category_forward.1} parent=0 // pred_region
    _
  $region21: #{hierarchical_category_forward.1} parent=0 // pred_fallthru
    _
  // Predicated region
  $region22: #{hierarchical_category_forward.1} parent=0 // pred_check
    _
  $region23: #{hierarchical_category_forward.1} parent=0 // pred_check_branch
    %25 = sbr.rel (0) target = $region25
  $region24: #{hierarchical_category_forward.1} parent=0 // pred_region
    _
  $region25: #{hierarchical_category_forward.1} parent=0 // pred_fallthru
    _
  // Predicated region
  $region26: #{hierarchical_category_forward.1} parent=0 // pred_check
    _
  $region27: #{hierarchical_category_forward.1} parent=0 // pred_check_branch
    %27 = sbr.rel (0) target = $region29
  $region28: #{hierarchical_category_forward.1} parent=0 // pred_region
    _
  $region29: #{hierarchical_category_forward.1} parent=0 // pred_fallthru
    _
  // Predicated region
  $region30: #{hierarchical_category_forward.1} parent=0 // pred_check
    _
  $region31: #{hierarchical_category_forward.1} parent=0 // pred_check_branch
    %29 = sbr.rel (0) target = $region33
  $region32: #{hierarchical_category_forward.1} parent=0 // pred_region
    _
  $region33: #{hierarchical_category_forward.1} parent=0 // pred_fallthru
    _
  // Predicated region
  $region34: #{hierarchical_category_forward.1} parent=0 // pred_check
    _
  $region35: #{hierarchical_category_forward.1} parent=0 // pred_check_branch
    %31 = sbr.rel (0) target = $region37
  $region36: #{hierarchical_category_forward.1} parent=0 // pred_region
    _
  $region37: #{hierarchical_category_forward.1} parent=0 // pred_fallthru
    _
  %v32 = vld [vmem:[%s0] sm:$0xff]
  %v33 = vld [vmem:[%s0 + $0x8] sm:$0xff]
  %v34 = vld [vmem:[%s0 + $0x10] sm:$0xff]
  %v35 = vld [vmem:[%s0 + $0x18] sm:$0xff]
  %v36 = vld [vmem:[%s0 + $0x20] sm:$0xff]
  %v37 = vld [vmem:[%s0 + $0x28] sm:$0xff]
  %v38 = vld [vmem:[%s0 + $0x30] sm:$0xff]
  %v39 = vld [vmem:[%s0 + $0x38] sm:$0xff]
  %v40 = vld [vmem:[%s2] sm:$0xff]
  %v41 = vld [vmem:[%s2 + $0x8] sm:$0xff]
  %v42 = vld [vmem:[%s2 + $0x10] sm:$0xff]
  %v43 = vld [vmem:[%s2 + $0x18] sm:$0xff]
  %v44 = vld [vmem:[%s2 + $0x20] sm:$0xff]
  %v45 = vld [vmem:[%s2 + $0x28] sm:$0xff]
  %v46 = vld [vmem:[%s2 + $0x30] sm:$0xff]
  %v47 = vld [vmem:[%s2 + $0x38] sm:$0xff]
  %v48 = vld [vmem:[%s2 + $0x40] sm:$0xff]
  %v49 = vld [vmem:[%s2 + $0x48] sm:$0xff]
  %v50 = vld [vmem:[%s2 + $0x50] sm:$0xff]
  %v51 = vld [vmem:[%s2 + $0x58] sm:$0xff]
  %v52 = vld [vmem:[%s2 + $0x60] sm:$0xff]
  %v53 = vld [vmem:[%s2 + $0x68] sm:$0xff]
  %v54 = vld [vmem:[%s2 + $0x70] sm:$0xff]
  %v55 = vld [vmem:[%s2 + $0x78] sm:$0xff]
  %v56 = vld [vmem:[%s2 + $0x80] sm:$0xff]
  %v57 = vld [vmem:[%s2 + $0x88] sm:$0xff]
  %v58 = vld [vmem:[%s2 + $0x90] sm:$0xff]
  %v59 = vld [vmem:[%s2 + $0x98] sm:$0xff]
  %v60 = vld [vmem:[%s2 + $0xa0] sm:$0xff]
  %v61 = vld [vmem:[%s2 + $0xa8] sm:$0xff]
  %v62 = vld [vmem:[%s2 + $0xb0] sm:$0xff]
  %v63 = vld [vmem:[%s2 + $0xb8] sm:$0xff]
  %v64 = vld [vmem:[%s2 + $0xc0] sm:$0xff]
  %v65 = vld [vmem:[%s2 + $0xc8] sm:$0xff]
  %v66 = vld [vmem:[%s2 + $0xd0] sm:$0xff]
  %v67 = vld [vmem:[%s2 + $0xd8] sm:$0xff]
  %v68 = vld [vmem:[%s2 + $0xe0] sm:$0xff]
  %v69 = vld [vmem:[%s2 + $0xe8] sm:$0xff]
  %v70 = vld [vmem:[%s2 + $0xf0] sm:$0xff]
  %v71 = vld [vmem:[%s2 + $0xf8] sm:$0xff]
  %v72 = vld [vmem:[%s2 + $0x100] sm:$0xff]
  %v73 = vld [vmem:[%s2 + $0x108] sm:$0xff]
  %v74 = vld [vmem:[%s2 + $0x110] sm:$0xff]
  %v75 = vld [vmem:[%s2 + $0x118] sm:$0xff]
  %v76 = vld [vmem:[%s2 + $0x120] sm:$0xff]
  %v77 = vld [vmem:[%s2 + $0x128] sm:$0xff]
  %v78 = vld [vmem:[%s2 + $0x130] sm:$0xff]
  %v79 = vld [vmem:[%s2 + $0x138] sm:$0xff]
  %v80 = vld [vmem:[%s2 + $0x140] sm:$0xff]
  %v81 = vld [vmem:[%s2 + $0x148] sm:$0xff]
  %v82 = vld [vmem:[%s2 + $0x150] sm:$0xff]
  %v83 = vld [vmem:[%s2 + $0x158] sm:$0xff]
  %v84 = vld [vmem:[%s2 + $0x160] sm:$0xff]
  %v85 = vld [vmem:[%s2 + $0x168] sm:$0xff]
  %v86 = vld [vmem:[%s2 + $0x170] sm:$0xff]
  %v87 = vld [vmem:[%s2 + $0x178] sm:$0xff]
  %v88 = vld [vmem:[%s2 + $0x180] sm:$0xff]
  %v89 = vld [vmem:[%s2 + $0x188] sm:$0xff]
  %v90 = vld [vmem:[%s2 + $0x190] sm:$0xff]
  %v91 = vld [vmem:[%s2 + $0x198] sm:$0xff]
  %v92 = vld [vmem:[%s2 + $0x1a0] sm:$0xff]
  %v93 = vld [vmem:[%s2 + $0x1a8] sm:$0xff]
  %v94 = vld [vmem:[%s2 + $0x1b0] sm:$0xff]
  %v95 = vld [vmem:[%s2 + $0x1b8] sm:$0xff]
  %v96 = vld [vmem:[%s2 + $0x1c0] sm:$0xff]
  %v97 = vld [vmem:[%s2 + $0x1c8] sm:$0xff]
  %v98 = vld [vmem:[%s2 + $0x1d0] sm:$0xff]
  %v99 = vld [vmem:[%s2 + $0x1d8] sm:$0xff]
  %v100 = vld [vmem:[%s2 + $0x1e0] sm:$0xff]
  %v101 = vld [vmem:[%s2 + $0x1e8] sm:$0xff]
  %v102 = vld [vmem:[%s2 + $0x1f0] sm:$0xff]
  %v103 = vld [vmem:[%s2 + $0x1f8] sm:$0xff]
  %v104 = vld [vmem:[%s2 + $0x200] sm:$0xff]
  %v105 = vld [vmem:[%s2 + $0x208] sm:$0xff]
  %v106 = vld [vmem:[%s2 + $0x210] sm:$0xff]
  %v107 = vld [vmem:[%s2 + $0x218] sm:$0xff]
  %v108 = vld [vmem:[%s2 + $0x220] sm:$0xff]
  %v109 = vld [vmem:[%s2 + $0x228] sm:$0xff]
  %v110 = vld [vmem:[%s2 + $0x230] sm:$0xff]
  %v111 = vld [vmem:[%s2 + $0x238] sm:$0xff]
  %v112 = vld [vmem:[%s2 + $0x240] sm:$0xff]
  %v113 = vld [vmem:[%s2 + $0x248] sm:$0xff]
  %v114 = vld [vmem:[%s2 + $0x250] sm:$0xff]
  %v115 = vld [vmem:[%s2 + $0x258] sm:$0xff]
  %v116 = vld [vmem:[%s2 + $0x260] sm:$0xff]
  %v117 = vld [vmem:[%s2 + $0x268] sm:$0xff]
  %v118 = vld [vmem:[%s2 + $0x270] sm:$0xff]
  %v119 = vld [vmem:[%s2 + $0x278] sm:$0xff]
  %v120 = vld [vmem:[%s2 + $0x280] sm:$0xff]
  %v121 = vld [vmem:[%s2 + $0x288] sm:$0xff]
  %v122 = vld [vmem:[%s2 + $0x290] sm:$0xff]
  %v123 = vld [vmem:[%s2 + $0x298] sm:$0xff]
  %v124 = vld [vmem:[%s2 + $0x2a0] sm:$0xff]
  %v125 = vld [vmem:[%s2 + $0x2a8] sm:$0xff]
  %v126 = vld [vmem:[%s2 + $0x2b0] sm:$0xff]
  %v127 = vld [vmem:[%s2 + $0x2b8] sm:$0xff]
  %v128 = vld [vmem:[%s2 + $0x2c0] sm:$0xff]
  %v129 = vld [vmem:[%s2 + $0x2c8] sm:$0xff]
  %v130 = vld [vmem:[%s2 + $0x2d0] sm:$0xff]
  %v131 = vld [vmem:[%s2 + $0x2d8] sm:$0xff]
  %v132 = vld [vmem:[%s2 + $0x2e0] sm:$0xff]
  %v133 = vld [vmem:[%s2 + $0x2e8] sm:$0xff]
  %v134 = vld [vmem:[%s2 + $0x2f0] sm:$0xff]
  %v135 = vld [vmem:[%s2 + $0x2f8] sm:$0xff]
  %v136 = vld [vmem:[%s2 + $0x300] sm:$0xff]
  %v137 = vld [vmem:[%s2 + $0x308] sm:$0xff]
  %v138 = vld [vmem:[%s2 + $0x310] sm:$0xff]
  %v139 = vld [vmem:[%s2 + $0x318] sm:$0xff]
  %v140 = vld [vmem:[%s2 + $0x320] sm:$0xff]
  %v141 = vld [vmem:[%s2 + $0x328] sm:$0xff]
  %v142 = vld [vmem:[%s2 + $0x330] sm:$0xff]
  %v143 = vld [vmem:[%s2 + $0x338] sm:$0xff]
  %v144 = vld [vmem:[%s2 + $0x340] sm:$0xff]
  %v145 = vld [vmem:[%s2 + $0x348] sm:$0xff]
  %v146 = vld [vmem:[%s2 + $0x350] sm:$0xff]
  %v147 = vld [vmem:[%s2 + $0x358] sm:$0xff]
  %v148 = vld [vmem:[%s2 + $0x360] sm:$0xff]
  %v149 = vld [vmem:[%s2 + $0x368] sm:$0xff]
  %v150 = vld [vmem:[%s2 + $0x370] sm:$0xff]
  %v151 = vld [vmem:[%s2 + $0x378] sm:$0xff]
  %v152 = vld [vmem:[%s2 + $0x380] sm:$0xff]
  %v153 = vld [vmem:[%s2 + $0x388] sm:$0xff]
  %v154 = vld [vmem:[%s2 + $0x390] sm:$0xff]
  %v155 = vld [vmem:[%s2 + $0x398] sm:$0xff]
  %v156 = vld [vmem:[%s2 + $0x3a0] sm:$0xff]
  %v157 = vld [vmem:[%s2 + $0x3a8] sm:$0xff]
  %v158 = vld [vmem:[%s2 + $0x3b0] sm:$0xff]
  %v159 = vld [vmem:[%s2 + $0x3b8] sm:$0xff]
  %v160 = vld [vmem:[%s2 + $0x3c0] sm:$0xff]
  %v161 = vld [vmem:[%s2 + $0x3c8] sm:$0xff]
  %v162 = vld [vmem:[%s2 + $0x3d0] sm:$0xff]
  %v163 = vld [vmem:[%s2 + $0x3d8] sm:$0xff]
  %v164 = vld [vmem:[%s2 + $0x3e0] sm:$0xff]
  %v165 = vld [vmem:[%s2 + $0x3e8] sm:$0xff]
  %v166 = vld [vmem:[%s2 + $0x3f0] sm:$0xff]
  %v167 = vld [vmem:[%s2 + $0x3f8] sm:$0xff]
  %v168 = vld [vmem:[%s2 + $0x400] sm:$0xff]
  %v169 = vld [vmem:[%s2 + $0x408] sm:$0xff]
  %v170 = vld [vmem:[%s2 + $0x410] sm:$0xff]
  %v171 = vld [vmem:[%s2 + $0x418] sm:$0xff]
  %v172 = vld [vmem:[%s2 + $0x420] sm:$0xff]
  %v173 = vld [vmem:[%s2 + $0x428] sm:$0xff]
  %v174 = vld [vmem:[%s2 + $0x430] sm:$0xff]
  %v175 = vld [vmem:[%s2 + $0x438] sm:$0xff]
  %v176 = vld [vmem:[%s2 + $0x440] sm:$0xff]
  %v177 = vld [vmem:[%s2 + $0x448] sm:$0xff]
  %v178 = vld [vmem:[%s2 + $0x450] sm:$0xff]
  %v179 = vld [vmem:[%s2 + $0x458] sm:$0xff]
  %v180 = vld [vmem:[%s2 + $0x460] sm:$0xff]
  %v181 = vld [vmem:[%s2 + $0x468] sm:$0xff]
  %v182 = vld [vmem:[%s2 + $0x470] sm:$0xff]
  %v183 = vld [vmem:[%s2 + $0x478] sm:$0xff]
  %v184 = vld [vmem:[%s2 + $0x480] sm:$0xff]
  %v185 = vld [vmem:[%s2 + $0x488] sm:$0xff]
  %v186 = vld [vmem:[%s2 + $0x490] sm:$0xff]
  %v187 = vld [vmem:[%s2 + $0x498] sm:$0xff]
  %v188 = vld [vmem:[%s2 + $0x4a0] sm:$0xff]
  %v189 = vld [vmem:[%s2 + $0x4a8] sm:$0xff]
  %v190 = vld [vmem:[%s2 + $0x4b0] sm:$0xff]
  %v191 = vld [vmem:[%s2 + $0x4b8] sm:$0xff]
  %v192 = vld [vmem:[%s2 + $0x4c0] sm:$0xff]
  %v193 = vld [vmem:[%s2 + $0x4c8] sm:$0xff]
  %v194 = vld [vmem:[%s2 + $0x4d0] sm:$0xff]
  %v195 = vld [vmem:[%s2 + $0x4d8] sm:$0xff]
  %v196 = vld [vmem:[%s2 + $0x4e0] sm:$0xff]
  %v197 = vld [vmem:[%s2 + $0x4e8] sm:$0xff]
  %v198 = vld [vmem:[%s2 + $0x4f0] sm:$0xff]
  %v199 = vld [vmem:[%s2 + $0x4f8] sm:$0xff]
  %v200 = vld [vmem:[%s2 + $0x500] sm:$0xff]
  %v201 = vld [vmem:[%s2 + $0x508] sm:$0xff]
  %v202 = vld [vmem:[%s2 + $0x510] sm:$0xff]
  %v203 = vld [vmem:[%s2 + $0x518] sm:$0xff]
  %v204 = vld [vmem:[%s2 + $0x520] sm:$0xff]
  %v205 = vld [vmem:[%s2 + $0x528] sm:$0xff]
  %v206 = vld [vmem:[%s2 + $0x530] sm:$0xff]
  %v207 = vld [vmem:[%s2 + $0x538] sm:$0xff]
  %v208 = vld [vmem:[%s2 + $0x540] sm:$0xff]
  %v209 = vld [vmem:[%s2 + $0x548] sm:$0xff]
  %v210 = vld [vmem:[%s2 + $0x550] sm:$0xff]
  %v211 = vld [vmem:[%s2 + $0x558] sm:$0xff]
  %v212 = vld [vmem:[%s2 + $0x560] sm:$0xff]
  %v213 = vld [vmem:[%s2 + $0x568] sm:$0xff]
  %v214 = vld [vmem:[%s2 + $0x570] sm:$0xff]
  %v215 = vld [vmem:[%s2 + $0x578] sm:$0xff]
  %v216 = vld [vmem:[%s2 + $0x580] sm:$0xff]
  %v217 = vld [vmem:[%s2 + $0x588] sm:$0xff]
  %v218 = vld [vmem:[%s2 + $0x590] sm:$0xff]
  %v219 = vld [vmem:[%s2 + $0x598] sm:$0xff]
  %v220 = vld [vmem:[%s2 + $0x5a0] sm:$0xff]
  %v221 = vld [vmem:[%s2 + $0x5a8] sm:$0xff]
  %v222 = vld [vmem:[%s2 + $0x5b0] sm:$0xff]
  %v223 = vld [vmem:[%s2 + $0x5b8] sm:$0xff]
  %v224 = vld [vmem:[%s2 + $0x5c0] sm:$0xff]
  %v225 = vld [vmem:[%s2 + $0x5c8] sm:$0xff]
  %v226 = vld [vmem:[%s2 + $0x5d0] sm:$0xff]
  %v227 = vld [vmem:[%s2 + $0x5d8] sm:$0xff]
  %v228 = vld [vmem:[%s2 + $0x5e0] sm:$0xff]
  %v229 = vld [vmem:[%s2 + $0x5e8] sm:$0xff]
  %v230 = vld [vmem:[%s2 + $0x5f0] sm:$0xff]
  %v231 = vld [vmem:[%s2 + $0x5f8] sm:$0xff]
  %v232 = vld [vmem:[%s2 + $0x600] sm:$0xff]
  %v233 = vld [vmem:[%s2 + $0x608] sm:$0xff]
  %v234 = vld [vmem:[%s2 + $0x610] sm:$0xff]
  %v235 = vld [vmem:[%s2 + $0x618] sm:$0xff]
  %v236 = vld [vmem:[%s2 + $0x620] sm:$0xff]
  %v237 = vld [vmem:[%s2 + $0x628] sm:$0xff]
  %v238 = vld [vmem:[%s2 + $0x630] sm:$0xff]
  %v239 = vld [vmem:[%s2 + $0x638] sm:$0xff]
  %v240 = vld [vmem:[%s2 + $0x640] sm:$0xff]
  %v241 = vld [vmem:[%s2 + $0x648] sm:$0xff]
  %v242 = vld [vmem:[%s2 + $0x650] sm:$0xff]
  %v243 = vld [vmem:[%s2 + $0x658] sm:$0xff]
  %v244 = vld [vmem:[%s2 + $0x660] sm:$0xff]
  %v245 = vld [vmem:[%s2 + $0x668] sm:$0xff]
  %v246 = vld [vmem:[%s2 + $0x670] sm:$0xff]
  %v247 = vld [vmem:[%s2 + $0x678] sm:$0xff]
  %v248 = vld [vmem:[%s2 + $0x680] sm:$0xff]
  %v249 = vld [vmem:[%s2 + $0x688] sm:$0xff]
  %v250 = vld [vmem:[%s2 + $0x690] sm:$0xff]
  %v251 = vld [vmem:[%s2 + $0x698] sm:$0xff]
  %v252 = vld [vmem:[%s2 + $0x6a0] sm:$0xff]
  %v253 = vld [vmem:[%s2 + $0x6a8] sm:$0xff]
  %v254 = vld [vmem:[%s2 + $0x6b0] sm:$0xff]
  %v255 = vld [vmem:[%s2 + $0x6b8] sm:$0xff]
  %v256 = vld [vmem:[%s2 + $0x6c0] sm:$0xff]
  %v257 = vld [vmem:[%s2 + $0x6c8] sm:$0xff]
  %v258 = vld [vmem:[%s2 + $0x6d0] sm:$0xff]
  %v259 = vld [vmem:[%s2 + $0x6d8] sm:$0xff]
  %v260 = vld [vmem:[%s2 + $0x6e0] sm:$0xff]
  %v261 = vld [vmem:[%s2 + $0x6e8] sm:$0xff]
  %v262 = vld [vmem:[%s2 + $0x6f0] sm:$0xff]
  %v263 = vld [vmem:[%s2 + $0x6f8] sm:$0xff]
  %v264 = vld [vmem:[%s2 + $0x700] sm:$0xff]
  %v265 = vld [vmem:[%s2 + $0x708] sm:$0xff]
  %v266 = vld [vmem:[%s2 + $0x710] sm:$0xff]
  %v267 = vld [vmem:[%s2 + $0x718] sm:$0xff]
  %v268 = vld [vmem:[%s2 + $0x720] sm:$0xff]
  %v269 = vld [vmem:[%s2 + $0x728] sm:$0xff]
  %v270 = vld [vmem:[%s2 + $0x730] sm:$0xff]
  %v271 = vld [vmem:[%s2 + $0x738] sm:$0xff]
  %v272 = vld [vmem:[%s2 + $0x740] sm:$0xff]
  %v273 = vld [vmem:[%s2 + $0x748] sm:$0xff]
  %v274 = vld [vmem:[%s2 + $0x750] sm:$0xff]
  %v275 = vld [vmem:[%s2 + $0x758] sm:$0xff]
  %v276 = vld [vmem:[%s2 + $0x760] sm:$0xff]
  %v277 = vld [vmem:[%s2 + $0x768] sm:$0xff]
  %v278 = vld [vmem:[%s2 + $0x770] sm:$0xff]
  %v279 = vld [vmem:[%s2 + $0x778] sm:$0xff]
  %v280 = vld [vmem:[%s2 + $0x780] sm:$0xff]
  %v281 = vld [vmem:[%s2 + $0x788] sm:$0xff]
  %v282 = vld [vmem:[%s2 + $0x790] sm:$0xff]
  %v283 = vld [vmem:[%s2 + $0x798] sm:$0xff]
  %v284 = vld [vmem:[%s2 + $0x7a0] sm:$0xff]
  %v285 = vld [vmem:[%s2 + $0x7a8] sm:$0xff]
  %v286 = vld [vmem:[%s2 + $0x7b0] sm:$0xff]
  %v287 = vld [vmem:[%s2 + $0x7b8] sm:$0xff]
  %v288 = vld [vmem:[%s2 + $0x7c0] sm:$0xff]
  %v289 = vld [vmem:[%s2 + $0x7c8] sm:$0xff]
  %v290 = vld [vmem:[%s2 + $0x7d0] sm:$0xff]
  %v291 = vld [vmem:[%s2 + $0x7d8] sm:$0xff]
  %v292 = vld [vmem:[%s2 + $0x7e0] sm:$0xff]
  %v293 = vld [vmem:[%s2 + $0x7e8] sm:$0xff]
  %v294 = vld [vmem:[%s2 + $0x7f0] sm:$0xff]
  %v295 = vld [vmem:[%s2 + $0x7f8] sm:$0xff]
  %v296 = vld [vmem:[%s1] sm:$0xff]
  %v297 = vld [vmem:[%s1 + $0x8] sm:$0xff]
  %v298 = vld [vmem:[%s3] sm:$0xf]
  %300 = vset.pattern.permute.xlu0 0
  %301 = vperm.xlu0 %300, %v296
  %v302 = vpop.permute.xlu0 %301
  %305 = vset.pattern.permute.xlu0 0
  %306 = vperm.xlu0 %305, %v297
  %v307 = vpop.permute.xlu0 %306
  %v310 = vperm.slane %v298, 0
  %v311 = vperm.slane %v298, 1
  %v312 = vperm.slane %v298, 2
  %v313 = vperm.slane %v298, 3
  %v318 = vmul.f32 %v302, %v310
  %v319 = vmul.f32 %v302, %v311
  %v320 = vmul.f32 %v302, %v312
  %v321 = vmul.f32 %v302, %v313
  %v322 = vmul.f32 %v307, %v310
  %v323 = vmul.f32 %v307, %v311
  %v324 = vmul.f32 %v307, %v312
  %v325 = vmul.f32 %v307, %v313
  %v334 = vunpack.c.l.b16 %v32
  %v335 = vunpack.c.h.b16 %v32
  %v336 = vunpack.c.l.b16 %v33
  %v337 = vunpack.c.h.b16 %v33
  %v338 = vunpack.c.l.b16 %v34
  %v339 = vunpack.c.h.b16 %v34
  %v340 = vunpack.c.l.b16 %v35
  %v341 = vunpack.c.h.b16 %v35
  %v342 = vunpack.c.l.b16 %v36
  %v343 = vunpack.c.h.b16 %v36
  %v344 = vunpack.c.l.b16 %v37
  %v345 = vunpack.c.h.b16 %v37
  %v346 = vunpack.c.l.b16 %v38
  %v347 = vunpack.c.h.b16 %v38
  %v348 = vunpack.c.l.b16 %v39
  %v349 = vunpack.c.h.b16 %v39
  %v350 = vpack.c.b16 %v342, %v334
  %v351 = vpack.c.b16 %v343, %v335
  %v352 = vpack.c.b16 %v344, %v336
  %v353 = vpack.c.b16 %v345, %v337
  %v354 = vpack.c.b16 %v346, %v338
  %v355 = vpack.c.b16 %v347, %v339
  %v356 = vpack.c.b16 %v348, %v340
  %v357 = vpack.c.b16 %v349, %v341
  %v622 = vunpack.c.l.b16 %v40
  %v623 = vunpack.c.h.b16 %v40
  %v624 = vunpack.c.l.b16 %v41
  %v625 = vunpack.c.h.b16 %v41
  %v626 = vunpack.c.l.b16 %v42
  %v627 = vunpack.c.h.b16 %v42
  %v628 = vunpack.c.l.b16 %v43
  %v629 = vunpack.c.h.b16 %v43
  %v630 = vunpack.c.l.b16 %v44
  %v631 = vunpack.c.h.b16 %v44
  %v632 = vunpack.c.l.b16 %v45
  %v633 = vunpack.c.h.b16 %v45
  %v634 = vunpack.c.l.b16 %v46
  %v635 = vunpack.c.h.b16 %v46
  %v636 = vunpack.c.l.b16 %v47
  %v637 = vunpack.c.h.b16 %v47
  %v638 = vunpack.c.l.b16 %v48
  %v639 = vunpack.c.h.b16 %v48
  %v640 = vunpack.c.l.b16 %v49
  %v641 = vunpack.c.h.b16 %v49
  %v642 = vunpack.c.l.b16 %v50
  %v643 = vunpack.c.h.b16 %v50
  %v644 = vunpack.c.l.b16 %v51
  %v645 = vunpack.c.h.b16 %v51
  %v646 = vunpack.c.l.b16 %v52
  %v647 = vunpack.c.h.b16 %v52
  %v648 = vunpack.c.l.b16 %v53
  %v649 = vunpack.c.h.b16 %v53
  %v650 = vunpack.c.l.b16 %v54
  %v651 = vunpack.c.h.b16 %v54
  %v652 = vunpack.c.l.b16 %v55
  %v653 = vunpack.c.h.b16 %v55
  %v654 = vunpack.c.l.b16 %v56
  %v655 = vunpack.c.h.b16 %v56
  %v656 = vunpack.c.l.b16 %v57
  %v657 = vunpack.c.h.b16 %v57
  %v658 = vunpack.c.l.b16 %v58
  %v659 = vunpack.c.h.b16 %v58
  %v660 = vunpack.c.l.b16 %v59
  %v661 = vunpack.c.h.b16 %v59
  %v662 = vunpack.c.l.b16 %v60
  %v663 = vunpack.c.h.b16 %v60
  %v664 = vunpack.c.l.b16 %v61
  %v665 = vunpack.c.h.b16 %v61
  %v666 = vunpack.c.l.b16 %v62
  %v667 = vunpack.c.h.b16 %v62
  %v668 = vunpack.c.l.b16 %v63
  %v669 = vunpack.c.h.b16 %v63
  %v670 = vunpack.c.l.b16 %v64
  %v671 = vunpack.c.h.b16 %v64
  %v672 = vunpack.c.l.b16 %v65
  %v673 = vunpack.c.h.b16 %v65
  %v674 = vunpack.c.l.b16 %v66
  %v675 = vunpack.c.h.b16 %v66
  %v676 = vunpack.c.l.b16 %v67
  %v677 = vunpack.c.h.b16 %v67
  %v678 = vunpack.c.l.b16 %v68
  %v679 = vunpack.c.h.b16 %v68
  %v680 = vunpack.c.l.b16 %v69
  %v681 = vunpack.c.h.b16 %v69
  %v682 = vunpack.c.l.b16 %v70
  %v683 = vunpack.c.h.b16 %v70
  %v684 = vunpack.c.l.b16 %v71
  %v685 = vunpack.c.h.b16 %v71
  %v686 = vunpack.c.l.b16 %v72
  %v687 = vunpack.c.h.b16 %v72
  %v688 = vunpack.c.l.b16 %v73
  %v689 = vunpack.c.h.b16 %v73
  %v690 = vunpack.c.l.b16 %v74
  %v691 = vunpack.c.h.b16 %v74
  %v692 = vunpack.c.l.b16 %v75
  %v693 = vunpack.c.h.b16 %v75
  %v694 = vunpack.c.l.b16 %v76
  %v695 = vunpack.c.h.b16 %v76
  %v696 = vunpack.c.l.b16 %v77
  %v697 = vunpack.c.h.b16 %v77
  %v698 = vunpack.c.l.b16 %v78
  %v699 = vunpack.c.h.b16 %v78
  %v700 = vunpack.c.l.b16 %v79
  %v701 = vunpack.c.h.b16 %v79
  %v702 = vunpack.c.l.b16 %v80
  %v703 = vunpack.c.h.b16 %v80
  %v704 = vunpack.c.l.b16 %v81
  %v705 = vunpack.c.h.b16 %v81
  %v706 = vunpack.c.l.b16 %v82
  %v707 = vunpack.c.h.b16 %v82
  %v708 = vunpack.c.l.b16 %v83
  %v709 = vunpack.c.h.b16 %v83
  %v710 = vunpack.c.l.b16 %v84
  %v711 = vunpack.c.h.b16 %v84
  %v712 = vunpack.c.l.b16 %v85
  %v713 = vunpack.c.h.b16 %v85
  %v714 = vunpack.c.l.b16 %v86
  %v715 = vunpack.c.h.b16 %v86
  %v716 = vunpack.c.l.b16 %v87
  %v717 = vunpack.c.h.b16 %v87
  %v718 = vunpack.c.l.b16 %v88
  %v719 = vunpack.c.h.b16 %v88
  %v720 = vunpack.c.l.b16 %v89
  %v721 = vunpack.c.h.b16 %v89
  %v722 = vunpack.c.l.b16 %v90
  %v723 = vunpack.c.h.b16 %v90
  %v724 = vunpack.c.l.b16 %v91
  %v725 = vunpack.c.h.b16 %v91
  %v726 = vunpack.c.l.b16 %v92
  %v727 = vunpack.c.h.b16 %v92
  %v728 = vunpack.c.l.b16 %v93
  %v729 = vunpack.c.h.b16 %v93
  %v730 = vunpack.c.l.b16 %v94
  %v731 = vunpack.c.h.b16 %v94
  %v732 = vunpack.c.l.b16 %v95
  %v733 = vunpack.c.h.b16 %v95
  %v734 = vunpack.c.l.b16 %v96
  %v735 = vunpack.c.h.b16 %v96
  %v736 = vunpack.c.l.b16 %v97
  %v737 = vunpack.c.h.b16 %v97
  %v738 = vunpack.c.l.b16 %v98
  %v739 = vunpack.c.h.b16 %v98
  %v740 = vunpack.c.l.b16 %v99
  %v741 = vunpack.c.h.b16 %v99
  %v742 = vunpack.c.l.b16 %v100
  %v743 = vunpack.c.h.b16 %v100
  %v744 = vunpack.c.l.b16 %v101
  %v745 = vunpack.c.h.b16 %v101
  %v746 = vunpack.c.l.b16 %v102
  %v747 = vunpack.c.h.b16 %v102
  %v748 = vunpack.c.l.b16 %v103
  %v749 = vunpack.c.h.b16 %v103
  %v750 = vunpack.c.l.b16 %v104
  %v751 = vunpack.c.h.b16 %v104
  %v752 = vunpack.c.l.b16 %v105
  %v753 = vunpack.c.h.b16 %v105
  %v754 = vunpack.c.l.b16 %v106
  %v755 = vunpack.c.h.b16 %v106
  %v756 = vunpack.c.l.b16 %v107
  %v757 = vunpack.c.h.b16 %v107
  %v758 = vunpack.c.l.b16 %v108
  %v759 = vunpack.c.h.b16 %v108
  %v760 = vunpack.c.l.b16 %v109
  %v761 = vunpack.c.h.b16 %v109
  %v762 = vunpack.c.l.b16 %v110
  %v763 = vunpack.c.h.b16 %v110
  %v764 = vunpack.c.l.b16 %v111
  %v765 = vunpack.c.h.b16 %v111
  %v766 = vunpack.c.l.b16 %v112
  %v767 = vunpack.c.h.b16 %v112
  %v768 = vunpack.c.l.b16 %v113
  %v769 = vunpack.c.h.b16 %v113
  %v770 = vunpack.c.l.b16 %v114
  %v771 = vunpack.c.h.b16 %v114
  %v772 = vunpack.c.l.b16 %v115
  %v773 = vunpack.c.h.b16 %v115
  %v774 = vunpack.c.l.b16 %v116
  %v775 = vunpack.c.h.b16 %v116
  %v776 = vunpack.c.l.b16 %v117
  %v777 = vunpack.c.h.b16 %v117
  %v778 = vunpack.c.l.b16 %v118
  %v779 = vunpack.c.h.b16 %v118
  %v780 = vunpack.c.l.b16 %v119
  %v781 = vunpack.c.h.b16 %v119
  %v782 = vunpack.c.l.b16 %v120
  %v783 = vunpack.c.h.b16 %v120
  %v784 = vunpack.c.l.b16 %v121
  %v785 = vunpack.c.h.b16 %v121
  %v786 = vunpack.c.l.b16 %v122
  %v787 = vunpack.c.h.b16 %v122
  %v788 = vunpack.c.l.b16 %v123
  %v789 = vunpack.c.h.b16 %v123
  %v790 = vunpack.c.l.b16 %v124
  %v791 = vunpack.c.h.b16 %v124
  %v792 = vunpack.c.l.b16 %v125
  %v793 = vunpack.c.h.b16 %v125
  %v794 = vunpack.c.l.b16 %v126
  %v795 = vunpack.c.h.b16 %v126
  %v796 = vunpack.c.l.b16 %v127
  %v797 = vunpack.c.h.b16 %v127
  %v798 = vunpack.c.l.b16 %v128
  %v799 = vunpack.c.h.b16 %v128
  %v800 = vunpack.c.l.b16 %v129
  %v801 = vunpack.c.h.b16 %v129
  %v802 = vunpack.c.l.b16 %v130
  %v803 = vunpack.c.h.b16 %v130
  %v804 = vunpack.c.l.b16 %v131
  %v805 = vunpack.c.h.b16 %v131
  %v806 = vunpack.c.l.b16 %v132
  %v807 = vunpack.c.h.b16 %v132
  %v808 = vunpack.c.l.b16 %v133
  %v809 = vunpack.c.h.b16 %v133
  %v810 = vunpack.c.l.b16 %v134
  %v811 = vunpack.c.h.b16 %v134
  %v812 = vunpack.c.l.b16 %v135
  %v813 = vunpack.c.h.b16 %v135
  %v814 = vunpack.c.l.b16 %v136
  %v815 = vunpack.c.h.b16 %v136
  %v816 = vunpack.c.l.b16 %v137
  %v817 = vunpack.c.h.b16 %v137
  %v818 = vunpack.c.l.b16 %v138
  %v819 = vunpack.c.h.b16 %v138
  %v820 = vunpack.c.l.b16 %v139
  %v821 = vunpack.c.h.b16 %v139
  %v822 = vunpack.c.l.b16 %v140
  %v823 = vunpack.c.h.b16 %v140
  %v824 = vunpack.c.l.b16 %v141
  %v825 = vunpack.c.h.b16 %v141
  %v826 = vunpack.c.l.b16 %v142
  %v827 = vunpack.c.h.b16 %v142
  %v828 = vunpack.c.l.b16 %v143
  %v829 = vunpack.c.h.b16 %v143
  %v830 = vunpack.c.l.b16 %v144
  %v831 = vunpack.c.h.b16 %v144
  %v832 = vunpack.c.l.b16 %v145
  %v833 = vunpack.c.h.b16 %v145
  %v834 = vunpack.c.l.b16 %v146
  %v835 = vunpack.c.h.b16 %v146
  %v836 = vunpack.c.l.b16 %v147
  %v837 = vunpack.c.h.b16 %v147
  %v838 = vunpack.c.l.b16 %v148
  %v839 = vunpack.c.h.b16 %v148
  %v840 = vunpack.c.l.b16 %v149
  %v841 = vunpack.c.h.b16 %v149
  %v842 = vunpack.c.l.b16 %v150
  %v843 = vunpack.c.h.b16 %v150
  %v844 = vunpack.c.l.b16 %v151
  %v845 = vunpack.c.h.b16 %v151
  %v846 = vunpack.c.l.b16 %v152
  %v847 = vunpack.c.h.b16 %v152
  %v848 = vunpack.c.l.b16 %v153
  %v849 = vunpack.c.h.b16 %v153
  %v850 = vunpack.c.l.b16 %v154
  %v851 = vunpack.c.h.b16 %v154
  %v852 = vunpack.c.l.b16 %v155
  %v853 = vunpack.c.h.b16 %v155
  %v854 = vunpack.c.l.b16 %v156
  %v855 = vunpack.c.h.b16 %v156
  %v856 = vunpack.c.l.b16 %v157
  %v857 = vunpack.c.h.b16 %v157
  %v858 = vunpack.c.l.b16 %v158
  %v859 = vunpack.c.h.b16 %v158
  %v860 = vunpack.c.l.b16 %v159
  %v861 = vunpack.c.h.b16 %v159
  %v862 = vunpack.c.l.b16 %v160
  %v863 = vunpack.c.h.b16 %v160
  %v864 = vunpack.c.l.b16 %v161
  %v865 = vunpack.c.h.b16 %v161
  %v866 = vunpack.c.l.b16 %v162
  %v867 = vunpack.c.h.b16 %v162
  %v868 = vunpack.c.l.b16 %v163
  %v869 = vunpack.c.h.b16 %v163
  %v870 = vunpack.c.l.b16 %v164
  %v871 = vunpack.c.h.b16 %v164
  %v872 = vunpack.c.l.b16 %v165
  %v873 = vunpack.c.h.b16 %v165
  %v874 = vunpack.c.l.b16 %v166
  %v875 = vunpack.c.h.b16 %v166
  %v876 = vunpack.c.l.b16 %v167
  %v877 = vunpack.c.h.b16 %v167
  %v878 = vunpack.c.l.b16 %v168
  %v879 = vunpack.c.h.b16 %v168
  %v880 = vunpack.c.l.b16 %v169
  %v881 = vunpack.c.h.b16 %v169
  %v882 = vunpack.c.l.b16 %v170
  %v883 = vunpack.c.h.b16 %v170
  %v884 = vunpack.c.l.b16 %v171
  %v885 = vunpack.c.h.b16 %v171
  %v886 = vunpack.c.l.b16 %v172
  %v887 = vunpack.c.h.b16 %v172
  %v888 = vunpack.c.l.b16 %v173
  %v889 = vunpack.c.h.b16 %v173
  %v890 = vunpack.c.l.b16 %v174
  %v891 = vunpack.c.h.b16 %v174
  %v892 = vunpack.c.l.b16 %v175
  %v893 = vunpack.c.h.b16 %v175
  %v894 = vunpack.c.l.b16 %v176
  %v895 = vunpack.c.h.b16 %v176
  %v896 = vunpack.c.l.b16 %v177
  %v897 = vunpack.c.h.b16 %v177
  %v898 = vunpack.c.l.b16 %v178
  %v899 = vunpack.c.h.b16 %v178
  %v900 = vunpack.c.l.b16 %v179
  %v901 = vunpack.c.h.b16 %v179
  %v902 = vunpack.c.l.b16 %v180
  %v903 = vunpack.c.h.b16 %v180
  %v904 = vunpack.c.l.b16 %v181
  %v905 = vunpack.c.h.b16 %v181
  %v906 = vunpack.c.l.b16 %v182
  %v907 = vunpack.c.h.b16 %v182
  %v908 = vunpack.c.l.b16 %v183
  %v909 = vunpack.c.h.b16 %v183
  %v910 = vunpack.c.l.b16 %v184
  %v911 = vunpack.c.h.b16 %v184
  %v912 = vunpack.c.l.b16 %v185
  %v913 = vunpack.c.h.b16 %v185
  %v914 = vunpack.c.l.b16 %v186
  %v915 = vunpack.c.h.b16 %v186
  %v916 = vunpack.c.l.b16 %v187
  %v917 = vunpack.c.h.b16 %v187
  %v918 = vunpack.c.l.b16 %v188
  %v919 = vunpack.c.h.b16 %v188
  %v920 = vunpack.c.l.b16 %v189
  %v921 = vunpack.c.h.b16 %v189
  %v922 = vunpack.c.l.b16 %v190
  %v923 = vunpack.c.h.b16 %v190
  %v924 = vunpack.c.l.b16 %v191
  %v925 = vunpack.c.h.b16 %v191
  %v926 = vunpack.c.l.b16 %v192
  %v927 = vunpack.c.h.b16 %v192
  %v928 = vunpack.c.l.b16 %v193
  %v929 = vunpack.c.h.b16 %v193
  %v930 = vunpack.c.l.b16 %v194
  %v931 = vunpack.c.h.b16 %v194
  %v932 = vunpack.c.l.b16 %v195
  %v933 = vunpack.c.h.b16 %v195
  %v934 = vunpack.c.l.b16 %v196
  %v935 = vunpack.c.h.b16 %v196
  %v936 = vunpack.c.l.b16 %v197
  %v937 = vunpack.c.h.b16 %v197
  %v938 = vunpack.c.l.b16 %v198
  %v939 = vunpack.c.h.b16 %v198
  %v940 = vunpack.c.l.b16 %v199
  %v941 = vunpack.c.h.b16 %v199
  %v942 = vunpack.c.l.b16 %v200
  %v943 = vunpack.c.h.b16 %v200
  %v944 = vunpack.c.l.b16 %v201
  %v945 = vunpack.c.h.b16 %v201
  %v946 = vunpack.c.l.b16 %v202
  %v947 = vunpack.c.h.b16 %v202
  %v948 = vunpack.c.l.b16 %v203
  %v949 = vunpack.c.h.b16 %v203
  %v950 = vunpack.c.l.b16 %v204
  %v951 = vunpack.c.h.b16 %v204
  %v952 = vunpack.c.l.b16 %v205
  %v953 = vunpack.c.h.b16 %v205
  %v954 = vunpack.c.l.b16 %v206
  %v955 = vunpack.c.h.b16 %v206
  %v956 = vunpack.c.l.b16 %v207
  %v957 = vunpack.c.h.b16 %v207
  %v958 = vunpack.c.l.b16 %v208
  %v959 = vunpack.c.h.b16 %v208
  %v960 = vunpack.c.l.b16 %v209
  %v961 = vunpack.c.h.b16 %v209
  %v962 = vunpack.c.l.b16 %v210
  %v963 = vunpack.c.h.b16 %v210
  %v964 = vunpack.c.l.b16 %v211
  %v965 = vunpack.c.h.b16 %v211
  %v966 = vunpack.c.l.b16 %v212
  %v967 = vunpack.c.h.b16 %v212
  %v968 = vunpack.c.l.b16 %v213
  %v969 = vunpack.c.h.b16 %v213
  %v970 = vunpack.c.l.b16 %v214
  %v971 = vunpack.c.h.b16 %v214
  %v972 = vunpack.c.l.b16 %v215
  %v973 = vunpack.c.h.b16 %v215
  %v974 = vunpack.c.l.b16 %v216
  %v975 = vunpack.c.h.b16 %v216
  %v976 = vunpack.c.l.b16 %v217
  %v977 = vunpack.c.h.b16 %v217
  %v978 = vunpack.c.l.b16 %v218
  %v979 = vunpack.c.h.b16 %v218
  %v980 = vunpack.c.l.b16 %v219
  %v981 = vunpack.c.h.b16 %v219
  %v982 = vunpack.c.l.b16 %v220
  %v983 = vunpack.c.h.b16 %v220
  %v984 = vunpack.c.l.b16 %v221
  %v985 = vunpack.c.h.b16 %v221
  %v986 = vunpack.c.l.b16 %v222
  %v987 = vunpack.c.h.b16 %v222
  %v988 = vunpack.c.l.b16 %v223
  %v989 = vunpack.c.h.b16 %v223
  %v990 = vunpack.c.l.b16 %v224
  %v991 = vunpack.c.h.b16 %v224
  %v992 = vunpack.c.l.b16 %v225
  %v993 = vunpack.c.h.b16 %v225
  %v994 = vunpack.c.l.b16 %v226
  %v995 = vunpack.c.h.b16 %v226
  %v996 = vunpack.c.l.b16 %v227
  %v997 = vunpack.c.h.b16 %v227
  %v998 = vunpack.c.l.b16 %v228
  %v999 = vunpack.c.h.b16 %v228
  %v1000 = vunpack.c.l.b16 %v229
  %v1001 = vunpack.c.h.b16 %v229
  %v1002 = vunpack.c.l.b16 %v230
  %v1003 = vunpack.c.h.b16 %v230
  %v1004 = vunpack.c.l.b16 %v231
  %v1005 = vunpack.c.h.b16 %v231
  %v1006 = vunpack.c.l.b16 %v232
  %v1007 = vunpack.c.h.b16 %v232
  %v1008 = vunpack.c.l.b16 %v233
  %v1009 = vunpack.c.h.b16 %v233
  %v1010 = vunpack.c.l.b16 %v234
  %v1011 = vunpack.c.h.b16 %v234
  %v1012 = vunpack.c.l.b16 %v235
  %v1013 = vunpack.c.h.b16 %v235
  %v1014 = vunpack.c.l.b16 %v236
  %v1015 = vunpack.c.h.b16 %v236
  %v1016 = vunpack.c.l.b16 %v237
  %v1017 = vunpack.c.h.b16 %v237
  %v1018 = vunpack.c.l.b16 %v238
  %v1019 = vunpack.c.h.b16 %v238
  %v1020 = vunpack.c.l.b16 %v239
  %v1021 = vunpack.c.h.b16 %v239
  %v1022 = vunpack.c.l.b16 %v240
  %v1023 = vunpack.c.h.b16 %v240
  %v1024 = vunpack.c.l.b16 %v241
  %v1025 = vunpack.c.h.b16 %v241
  %v1026 = vunpack.c.l.b16 %v242
  %v1027 = vunpack.c.h.b16 %v242
  %v1028 = vunpack.c.l.b16 %v243
  %v1029 = vunpack.c.h.b16 %v243
  %v1030 = vunpack.c.l.b16 %v244
  %v1031 = vunpack.c.h.b16 %v244
  %v1032 = vunpack.c.l.b16 %v245
  %v1033 = vunpack.c.h.b16 %v245
  %v1034 = vunpack.c.l.b16 %v246
  %v1035 = vunpack.c.h.b16 %v246
  %v1036 = vunpack.c.l.b16 %v247
  %v1037 = vunpack.c.h.b16 %v247
  %v1038 = vunpack.c.l.b16 %v248
  %v1039 = vunpack.c.h.b16 %v248
  %v1040 = vunpack.c.l.b16 %v249
  %v1041 = vunpack.c.h.b16 %v249
  %v1042 = vunpack.c.l.b16 %v250
  %v1043 = vunpack.c.h.b16 %v250
  %v1044 = vunpack.c.l.b16 %v251
  %v1045 = vunpack.c.h.b16 %v251
  %v1046 = vunpack.c.l.b16 %v252
  %v1047 = vunpack.c.h.b16 %v252
  %v1048 = vunpack.c.l.b16 %v253
  %v1049 = vunpack.c.h.b16 %v253
  %v1050 = vunpack.c.l.b16 %v254
  %v1051 = vunpack.c.h.b16 %v254
  %v1052 = vunpack.c.l.b16 %v255
  %v1053 = vunpack.c.h.b16 %v255
  %v1054 = vunpack.c.l.b16 %v256
  %v1055 = vunpack.c.h.b16 %v256
  %v1056 = vunpack.c.l.b16 %v257
  %v1057 = vunpack.c.h.b16 %v257
  %v1058 = vunpack.c.l.b16 %v258
  %v1059 = vunpack.c.h.b16 %v258
  %v1060 = vunpack.c.l.b16 %v259
  %v1061 = vunpack.c.h.b16 %v259
  %v1062 = vunpack.c.l.b16 %v260
  %v1063 = vunpack.c.h.b16 %v260
  %v1064 = vunpack.c.l.b16 %v261
  %v1065 = vunpack.c.h.b16 %v261
  %v1066 = vunpack.c.l.b16 %v262
  %v1067 = vunpack.c.h.b16 %v262
  %v1068 = vunpack.c.l.b16 %v263
  %v1069 = vunpack.c.h.b16 %v263
  %v1070 = vunpack.c.l.b16 %v264
  %v1071 = vunpack.c.h.b16 %v264
  %v1072 = vunpack.c.l.b16 %v265
  %v1073 = vunpack.c.h.b16 %v265
  %v1074 = vunpack.c.l.b16 %v266
  %v1075 = vunpack.c.h.b16 %v266
  %v1076 = vunpack.c.l.b16 %v267
  %v1077 = vunpack.c.h.b16 %v267
  %v1078 = vunpack.c.l.b16 %v268
  %v1079 = vunpack.c.h.b16 %v268
  %v1080 = vunpack.c.l.b16 %v269
  %v1081 = vunpack.c.h.b16 %v269
  %v1082 = vunpack.c.l.b16 %v270
  %v1083 = vunpack.c.h.b16 %v270
  %v1084 = vunpack.c.l.b16 %v271
  %v1085 = vunpack.c.h.b16 %v271
  %v1086 = vunpack.c.l.b16 %v272
  %v1087 = vunpack.c.h.b16 %v272
  %v1088 = vunpack.c.l.b16 %v273
  %v1089 = vunpack.c.h.b16 %v273
  %v1090 = vunpack.c.l.b16 %v274
  %v1091 = vunpack.c.h.b16 %v274
  %v1092 = vunpack.c.l.b16 %v275
  %v1093 = vunpack.c.h.b16 %v275
  %v1094 = vunpack.c.l.b16 %v276
  %v1095 = vunpack.c.h.b16 %v276
  %v1096 = vunpack.c.l.b16 %v277
  %v1097 = vunpack.c.h.b16 %v277
  %v1098 = vunpack.c.l.b16 %v278
  %v1099 = vunpack.c.h.b16 %v278
  %v1100 = vunpack.c.l.b16 %v279
  %v1101 = vunpack.c.h.b16 %v279
  %v1102 = vunpack.c.l.b16 %v280
  %v1103 = vunpack.c.h.b16 %v280
  %v1104 = vunpack.c.l.b16 %v281
  %v1105 = vunpack.c.h.b16 %v281
  %v1106 = vunpack.c.l.b16 %v282
  %v1107 = vunpack.c.h.b16 %v282
  %v1108 = vunpack.c.l.b16 %v283
  %v1109 = vunpack.c.h.b16 %v283
  %v1110 = vunpack.c.l.b16 %v284
  %v1111 = vunpack.c.h.b16 %v284
  %v1112 = vunpack.c.l.b16 %v285
  %v1113 = vunpack.c.h.b16 %v285
  %v1114 = vunpack.c.l.b16 %v286
  %v1115 = vunpack.c.h.b16 %v286
  %v1116 = vunpack.c.l.b16 %v287
  %v1117 = vunpack.c.h.b16 %v287
  %v1118 = vunpack.c.l.b16 %v288
  %v1119 = vunpack.c.h.b16 %v288
  %v1120 = vunpack.c.l.b16 %v289
  %v1121 = vunpack.c.h.b16 %v289
  %v1122 = vunpack.c.l.b16 %v290
  %v1123 = vunpack.c.h.b16 %v290
  %v1124 = vunpack.c.l.b16 %v291
  %v1125 = vunpack.c.h.b16 %v291
  %v1126 = vunpack.c.l.b16 %v292
  %v1127 = vunpack.c.h.b16 %v292
  %v1128 = vunpack.c.l.b16 %v293
  %v1129 = vunpack.c.h.b16 %v293
  %v1130 = vunpack.c.l.b16 %v294
  %v1131 = vunpack.c.h.b16 %v294
  %v1132 = vunpack.c.l.b16 %v295
  %v1133 = vunpack.c.h.b16 %v295
  %v1134 = vpack.c.b16 %v626, %v622
  %v1135 = vpack.c.b16 %v627, %v623
  %v1136 = vpack.c.b16 %v628, %v624
  %v1137 = vpack.c.b16 %v629, %v625
  %v1138 = vpack.c.b16 %v634, %v630
  %v1139 = vpack.c.b16 %v635, %v631
  %v1140 = vpack.c.b16 %v636, %v632
  %v1141 = vpack.c.b16 %v637, %v633
  %v1142 = vpack.c.b16 %v642, %v638
  %v1143 = vpack.c.b16 %v643, %v639
  %v1144 = vpack.c.b16 %v644, %v640
  %v1145 = vpack.c.b16 %v645, %v641
  %v1146 = vpack.c.b16 %v650, %v646
  %v1147 = vpack.c.b16 %v651, %v647
  %v1148 = vpack.c.b16 %v652, %v648
  %v1149 = vpack.c.b16 %v653, %v649
  %v1150 = vpack.c.b16 %v658, %v654
  %v1151 = vpack.c.b16 %v659, %v655
  %v1152 = vpack.c.b16 %v660, %v656
  %v1153 = vpack.c.b16 %v661, %v657
  %v1154 = vpack.c.b16 %v666, %v662
  %v1155 = vpack.c.b16 %v667, %v663
  %v1156 = vpack.c.b16 %v668, %v664
  %v1157 = vpack.c.b16 %v669, %v665
  %v1158 = vpack.c.b16 %v674, %v670
  %v1159 = vpack.c.b16 %v675, %v671
  %v1160 = vpack.c.b16 %v676, %v672
  %v1161 = vpack.c.b16 %v677, %v673
  %v1162 = vpack.c.b16 %v682, %v678
  %v1163 = vpack.c.b16 %v683, %v679
  %v1164 = vpack.c.b16 %v684, %v680
  %v1165 = vpack.c.b16 %v685, %v681
  %v1166 = vpack.c.b16 %v690, %v686
  %v1167 = vpack.c.b16 %v691, %v687
  %v1168 = vpack.c.b16 %v692, %v688
  %v1169 = vpack.c.b16 %v693, %v689
  %v1170 = vpack.c.b16 %v698, %v694
  %v1171 = vpack.c.b16 %v699, %v695
  %v1172 = vpack.c.b16 %v700, %v696
  %v1173 = vpack.c.b16 %v701, %v697
  %v1174 = vpack.c.b16 %v706, %v702
  %v1175 = vpack.c.b16 %v707, %v703
  %v1176 = vpack.c.b16 %v708, %v704
  %v1177 = vpack.c.b16 %v709, %v705
  %v1178 = vpack.c.b16 %v714, %v710
  %v1179 = vpack.c.b16 %v715, %v711
  %v1180 = vpack.c.b16 %v716, %v712
  %v1181 = vpack.c.b16 %v717, %v713
  %v1182 = vpack.c.b16 %v722, %v718
  %v1183 = vpack.c.b16 %v723, %v719
  %v1184 = vpack.c.b16 %v724, %v720
  %v1185 = vpack.c.b16 %v725, %v721
  %v1186 = vpack.c.b16 %v730, %v726
  %v1187 = vpack.c.b16 %v731, %v727
  %v1188 = vpack.c.b16 %v732, %v728
  %v1189 = vpack.c.b16 %v733, %v729
  %v1190 = vpack.c.b16 %v738, %v734
  %v1191 = vpack.c.b16 %v739, %v735
  %v1192 = vpack.c.b16 %v740, %v736
  %v1193 = vpack.c.b16 %v741, %v737
  %v1194 = vpack.c.b16 %v746, %v742
  %v1195 = vpack.c.b16 %v747, %v743
  %v1196 = vpack.c.b16 %v748, %v744
  %v1197 = vpack.c.b16 %v749, %v745
  %v1198 = vpack.c.b16 %v754, %v750
  %v1199 = vpack.c.b16 %v755, %v751
  %v1200 = vpack.c.b16 %v756, %v752
  %v1201 = vpack.c.b16 %v757, %v753
  %v1202 = vpack.c.b16 %v762, %v758
  %v1203 = vpack.c.b16 %v763, %v759
  %v1204 = vpack.c.b16 %v764, %v760
  %v1205 = vpack.c.b16 %v765, %v761
  %v1206 = vpack.c.b16 %v770, %v766
  %v1207 = vpack.c.b16 %v771, %v767
  %v1208 = vpack.c.b16 %v772, %v768
  %v1209 = vpack.c.b16 %v773, %v769
  %v1210 = vpack.c.b16 %v778, %v774
  %v1211 = vpack.c.b16 %v779, %v775
  %v1212 = vpack.c.b16 %v780, %v776
  %v1213 = vpack.c.b16 %v781, %v777
  %v1214 = vpack.c.b16 %v786, %v782
  %v1215 = vpack.c.b16 %v787, %v783
  %v1216 = vpack.c.b16 %v788, %v784
  %v1217 = vpack.c.b16 %v789, %v785
  %v1218 = vpack.c.b16 %v794, %v790
  %v1219 = vpack.c.b16 %v795, %v791
  %v1220 = vpack.c.b16 %v796, %v792
  %v1221 = vpack.c.b16 %v797, %v793
  %v1222 = vpack.c.b16 %v802, %v798
  %v1223 = vpack.c.b16 %v803, %v799
  %v1224 = vpack.c.b16 %v804, %v800
  %v1225 = vpack.c.b16 %v805, %v801
  %v1226 = vpack.c.b16 %v810, %v806
  %v1227 = vpack.c.b16 %v811, %v807
  %v1228 = vpack.c.b16 %v812, %v808
  %v1229 = vpack.c.b16 %v813, %v809
  %v1230 = vpack.c.b16 %v818, %v814
  %v1231 = vpack.c.b16 %v819, %v815
  %v1232 = vpack.c.b16 %v820, %v816
  %v1233 = vpack.c.b16 %v821, %v817
  %v1234 = vpack.c.b16 %v826, %v822
  %v1235 = vpack.c.b16 %v827, %v823
  %v1236 = vpack.c.b16 %v828, %v824
  %v1237 = vpack.c.b16 %v829, %v825
  %v1238 = vpack.c.b16 %v834, %v830
  %v1239 = vpack.c.b16 %v835, %v831
  %v1240 = vpack.c.b16 %v836, %v832
  %v1241 = vpack.c.b16 %v837, %v833
  %v1242 = vpack.c.b16 %v842, %v838
  %v1243 = vpack.c.b16 %v843, %v839
  %v1244 = vpack.c.b16 %v844, %v840
  %v1245 = vpack.c.b16 %v845, %v841
  %v1246 = vpack.c.b16 %v850, %v846
  %v1247 = vpack.c.b16 %v851, %v847
  %v1248 = vpack.c.b16 %v852, %v848
  %v1249 = vpack.c.b16 %v853, %v849
  %v1250 = vpack.c.b16 %v858, %v854
  %v1251 = vpack.c.b16 %v859, %v855
  %v1252 = vpack.c.b16 %v860, %v856
  %v1253 = vpack.c.b16 %v861, %v857
  %v1254 = vpack.c.b16 %v866, %v862
  %v1255 = vpack.c.b16 %v867, %v863
  %v1256 = vpack.c.b16 %v868, %v864
  %v1257 = vpack.c.b16 %v869, %v865
  %v1258 = vpack.c.b16 %v874, %v870
  %v1259 = vpack.c.b16 %v875, %v871
  %v1260 = vpack.c.b16 %v876, %v872
  %v1261 = vpack.c.b16 %v877, %v873
  %v1262 = vpack.c.b16 %v882, %v878
  %v1263 = vpack.c.b16 %v883, %v879
  %v1264 = vpack.c.b16 %v884, %v880
  %v1265 = vpack.c.b16 %v885, %v881
  %v1266 = vpack.c.b16 %v890, %v886
  %v1267 = vpack.c.b16 %v891, %v887
  %v1268 = vpack.c.b16 %v892, %v888
  %v1269 = vpack.c.b16 %v893, %v889
  %v1270 = vpack.c.b16 %v898, %v894
  %v1271 = vpack.c.b16 %v899, %v895
  %v1272 = vpack.c.b16 %v900, %v896
  %v1273 = vpack.c.b16 %v901, %v897
  %v1274 = vpack.c.b16 %v906, %v902
  %v1275 = vpack.c.b16 %v907, %v903
  %v1276 = vpack.c.b16 %v908, %v904
  %v1277 = vpack.c.b16 %v909, %v905
  %v1278 = vpack.c.b16 %v914, %v910
  %v1279 = vpack.c.b16 %v915, %v911
  %v1280 = vpack.c.b16 %v916, %v912
  %v1281 = vpack.c.b16 %v917, %v913
  %v1282 = vpack.c.b16 %v922, %v918
  %v1283 = vpack.c.b16 %v923, %v919
  %v1284 = vpack.c.b16 %v924, %v920
  %v1285 = vpack.c.b16 %v925, %v921
  %v1286 = vpack.c.b16 %v930, %v926
  %v1287 = vpack.c.b16 %v931, %v927
  %v1288 = vpack.c.b16 %v932, %v928
  %v1289 = vpack.c.b16 %v933, %v929
  %v1290 = vpack.c.b16 %v938, %v934
  %v1291 = vpack.c.b16 %v939, %v935
  %v1292 = vpack.c.b16 %v940, %v936
  %v1293 = vpack.c.b16 %v941, %v937
  %v1294 = vpack.c.b16 %v946, %v942
  %v1295 = vpack.c.b16 %v947, %v943
  %v1296 = vpack.c.b16 %v948, %v944
  %v1297 = vpack.c.b16 %v949, %v945
  %v1298 = vpack.c.b16 %v954, %v950
  %v1299 = vpack.c.b16 %v955, %v951
  %v1300 = vpack.c.b16 %v956, %v952
  %v1301 = vpack.c.b16 %v957, %v953
  %v1302 = vpack.c.b16 %v962, %v958
  %v1303 = vpack.c.b16 %v963, %v959
  %v1304 = vpack.c.b16 %v964, %v960
  %v1305 = vpack.c.b16 %v965, %v961
  %v1306 = vpack.c.b16 %v970, %v966
  %v1307 = vpack.c.b16 %v971, %v967
  %v1308 = vpack.c.b16 %v972, %v968
  %v1309 = vpack.c.b16 %v973, %v969
  %v1310 = vpack.c.b16 %v978, %v974
  %v1311 = vpack.c.b16 %v979, %v975
  %v1312 = vpack.c.b16 %v980, %v976
  %v1313 = vpack.c.b16 %v981, %v977
  %v1314 = vpack.c.b16 %v986, %v982
  %v1315 = vpack.c.b16 %v987, %v983
  %v1316 = vpack.c.b16 %v988, %v984
  %v1317 = vpack.c.b16 %v989, %v985
  %v1318 = vpack.c.b16 %v994, %v990
  %v1319 = vpack.c.b16 %v995, %v991
  %v1320 = vpack.c.b16 %v996, %v992
  %v1321 = vpack.c.b16 %v997, %v993
  %v1322 = vpack.c.b16 %v1002, %v998
  %v1323 = vpack.c.b16 %v1003, %v999
  %v1324 = vpack.c.b16 %v1004, %v1000
  %v1325 = vpack.c.b16 %v1005, %v1001
  %v1326 = vpack.c.b16 %v1010, %v1006
  %v1327 = vpack.c.b16 %v1011, %v1007
  %v1328 = vpack.c.b16 %v1012, %v1008
  %v1329 = vpack.c.b16 %v1013, %v1009
  %v1330 = vpack.c.b16 %v1018, %v1014
  %v1331 = vpack.c.b16 %v1019, %v1015
  %v1332 = vpack.c.b16 %v1020, %v1016
  %v1333 = vpack.c.b16 %v1021, %v1017
  %v1334 = vpack.c.b16 %v1026, %v1022
  %v1335 = vpack.c.b16 %v1027, %v1023
  %v1336 = vpack.c.b16 %v1028, %v1024
  %v1337 = vpack.c.b16 %v1029, %v1025
  %v1338 = vpack.c.b16 %v1034, %v1030
  %v1339 = vpack.c.b16 %v1035, %v1031
  %v1340 = vpack.c.b16 %v1036, %v1032
  %v1341 = vpack.c.b16 %v1037, %v1033
  %v1342 = vpack.c.b16 %v1042, %v1038
  %v1343 = vpack.c.b16 %v1043, %v1039
  %v1344 = vpack.c.b16 %v1044, %v1040
  %v1345 = vpack.c.b16 %v1045, %v1041
  %v1346 = vpack.c.b16 %v1050, %v1046
  %v1347 = vpack.c.b16 %v1051, %v1047
  %v1348 = vpack.c.b16 %v1052, %v1048
  %v1349 = vpack.c.b16 %v1053, %v1049
  %v1350 = vpack.c.b16 %v1058, %v1054
  %v1351 = vpack.c.b16 %v1059, %v1055
  %v1352 = vpack.c.b16 %v1060, %v1056
  %v1353 = vpack.c.b16 %v1061, %v1057
  %v1354 = vpack.c.b16 %v1066, %v1062
  %v1355 = vpack.c.b16 %v1067, %v1063
  %v1356 = vpack.c.b16 %v1068, %v1064
  %v1357 = vpack.c.b16 %v1069, %v1065
  %v1358 = vpack.c.b16 %v1074, %v1070
  %v1359 = vpack.c.b16 %v1075, %v1071
  %v1360 = vpack.c.b16 %v1076, %v1072
  %v1361 = vpack.c.b16 %v1077, %v1073
  %v1362 = vpack.c.b16 %v1082, %v1078
  %v1363 = vpack.c.b16 %v1083, %v1079
  %v1364 = vpack.c.b16 %v1084, %v1080
  %v1365 = vpack.c.b16 %v1085, %v1081
  %v1366 = vpack.c.b16 %v1090, %v1086
  %v1367 = vpack.c.b16 %v1091, %v1087
  %v1368 = vpack.c.b16 %v1092, %v1088
  %v1369 = vpack.c.b16 %v1093, %v1089
  %v1370 = vpack.c.b16 %v1098, %v1094
  %v1371 = vpack.c.b16 %v1099, %v1095
  %v1372 = vpack.c.b16 %v1100, %v1096
  %v1373 = vpack.c.b16 %v1101, %v1097
  %v1374 = vpack.c.b16 %v1106, %v1102
  %v1375 = vpack.c.b16 %v1107, %v1103
  %v1376 = vpack.c.b16 %v1108, %v1104
  %v1377 = vpack.c.b16 %v1109, %v1105
  %v1378 = vpack.c.b16 %v1114, %v1110
  %v1379 = vpack.c.b16 %v1115, %v1111
  %v1380 = vpack.c.b16 %v1116, %v1112
  %v1381 = vpack.c.b16 %v1117, %v1113
  %v1382 = vpack.c.b16 %v1122, %v1118
  %v1383 = vpack.c.b16 %v1123, %v1119
  %v1384 = vpack.c.b16 %v1124, %v1120
  %v1385 = vpack.c.b16 %v1125, %v1121
  %v1386 = vpack.c.b16 %v1130, %v1126
  %v1387 = vpack.c.b16 %v1131, %v1127
  %v1388 = vpack.c.b16 %v1132, %v1128
  %v1389 = vpack.c.b16 %v1133, %v1129
  %1646 = vmatpush.bf16.msra.mxu0 %v1162
  %1647 = vmatpush.bf16.msra.mxu0 %v1158
  %1648 = vmatpush.bf16.msra.mxu0 %v1154
  %1649 = vmatpush.bf16.msra.mxu0 %v1150
  %1650 = vmatpush.bf16.msra.mxu0 %v1146
  %1651 = vmatpush.bf16.msra.mxu0 %v1142
  %1652 = vmatpush.bf16.msra.mxu0 %v1138
  %1653 = vmatpush.bf16.msra.mxu0 %v1134
  %1654 = vmatmul.bf16.gmra.mxu0 %v350
  %v1655 = vpop.f32.mrf.mxu0
  %v1656 = vadd.f32 %v318, %v1655
  %v1657 = vpop.f32.mrf.mxu0
  %v1658 = vadd.f32 %v322, %v1657
  %1659 = vdwg.mxu0
  %1660 = vmatpush.bf16.msra.mxu0 %v1194
  %1661 = vmatpush.bf16.msra.mxu0 %v1190
  %1662 = vmatpush.bf16.msra.mxu0 %v1186
  %1663 = vmatpush.bf16.msra.mxu0 %v1182
  %1664 = vmatpush.bf16.msra.mxu0 %v1178
  %1665 = vmatpush.bf16.msra.mxu0 %v1174
  %1666 = vmatpush.bf16.msra.mxu0 %v1170
  %1667 = vmatpush.bf16.msra.mxu0 %v1166
  %1668 = vmatmul.bf16.gmra.mxu0 %v351
  %v1669 = vpop.f32.mrf.mxu0
  %v1670 = vadd.f32 %v1656, %v1669
  %v1671 = vpop.f32.mrf.mxu0
  %v1672 = vadd.f32 %v1658, %v1671
  %1673 = vdwg.mxu0
  %1674 = vmatpush.bf16.msra.mxu0 %v1226
  %1675 = vmatpush.bf16.msra.mxu0 %v1222
  %1676 = vmatpush.bf16.msra.mxu0 %v1218
  %1677 = vmatpush.bf16.msra.mxu0 %v1214
  %1678 = vmatpush.bf16.msra.mxu0 %v1210
  %1679 = vmatpush.bf16.msra.mxu0 %v1206
  %1680 = vmatpush.bf16.msra.mxu0 %v1202
  %1681 = vmatpush.bf16.msra.mxu0 %v1198
  %1682 = vmatmul.bf16.gmra.mxu0 %v352
  %v1683 = vpop.f32.mrf.mxu0
  %v1684 = vadd.f32 %v1670, %v1683
  %v1685 = vpop.f32.mrf.mxu0
  %v1686 = vadd.f32 %v1672, %v1685
  %1687 = vdwg.mxu0
  %1688 = vmatpush.bf16.msra.mxu0 %v1258
  %1689 = vmatpush.bf16.msra.mxu0 %v1254
  %1690 = vmatpush.bf16.msra.mxu0 %v1250
  %1691 = vmatpush.bf16.msra.mxu0 %v1246
  %1692 = vmatpush.bf16.msra.mxu0 %v1242
  %1693 = vmatpush.bf16.msra.mxu0 %v1238
  %1694 = vmatpush.bf16.msra.mxu0 %v1234
  %1695 = vmatpush.bf16.msra.mxu0 %v1230
  %1696 = vmatmul.bf16.gmra.mxu0 %v353
  %v1697 = vpop.f32.mrf.mxu0
  %v1698 = vadd.f32 %v1684, %v1697
  %v1699 = vpop.f32.mrf.mxu0
  %v1700 = vadd.f32 %v1686, %v1699
  %1701 = vdwg.mxu0
  %1702 = vmatpush.bf16.msra.mxu0 %v1290
  %1703 = vmatpush.bf16.msra.mxu0 %v1286
  %1704 = vmatpush.bf16.msra.mxu0 %v1282
  %1705 = vmatpush.bf16.msra.mxu0 %v1278
  %1706 = vmatpush.bf16.msra.mxu0 %v1274
  %1707 = vmatpush.bf16.msra.mxu0 %v1270
  %1708 = vmatpush.bf16.msra.mxu0 %v1266
  %1709 = vmatpush.bf16.msra.mxu0 %v1262
  %1710 = vmatmul.bf16.gmra.mxu0 %v354
  %v1711 = vpop.f32.mrf.mxu0
  %v1712 = vadd.f32 %v1698, %v1711
  %v1713 = vpop.f32.mrf.mxu0
  %v1714 = vadd.f32 %v1700, %v1713
  %1715 = vdwg.mxu0
  %1716 = vmatpush.bf16.msra.mxu0 %v1322
  %1717 = vmatpush.bf16.msra.mxu0 %v1318
  %1718 = vmatpush.bf16.msra.mxu0 %v1314
  %1719 = vmatpush.bf16.msra.mxu0 %v1310
  %1720 = vmatpush.bf16.msra.mxu0 %v1306
  %1721 = vmatpush.bf16.msra.mxu0 %v1302
  %1722 = vmatpush.bf16.msra.mxu0 %v1298
  %1723 = vmatpush.bf16.msra.mxu0 %v1294
  %1724 = vmatmul.bf16.gmra.mxu0 %v355
  %v1725 = vpop.f32.mrf.mxu0
  %v1726 = vadd.f32 %v1712, %v1725
  %v1727 = vpop.f32.mrf.mxu0
  %v1728 = vadd.f32 %v1714, %v1727
  %1729 = vdwg.mxu0
  %1730 = vmatpush.bf16.msra.mxu0 %v1354
  %1731 = vmatpush.bf16.msra.mxu0 %v1350
  %1732 = vmatpush.bf16.msra.mxu0 %v1346
  %1733 = vmatpush.bf16.msra.mxu0 %v1342
  %1734 = vmatpush.bf16.msra.mxu0 %v1338
  %1735 = vmatpush.bf16.msra.mxu0 %v1334
  %1736 = vmatpush.bf16.msra.mxu0 %v1330
  %1737 = vmatpush.bf16.msra.mxu0 %v1326
  %1738 = vmatmul.bf16.gmra.mxu0 %v356
  %v1739 = vpop.f32.mrf.mxu0
  %v1740 = vadd.f32 %v1726, %v1739
  %v1741 = vpop.f32.mrf.mxu0
  %v1742 = vadd.f32 %v1728, %v1741
  %1743 = vdwg.mxu0
  %1744 = vmatpush.bf16.msra.mxu0 %v1386
  %1745 = vmatpush.bf16.msra.mxu0 %v1382
  %1746 = vmatpush.bf16.msra.mxu0 %v1378
  %1747 = vmatpush.bf16.msra.mxu0 %v1374
  %1748 = vmatpush.bf16.msra.mxu0 %v1370
  %1749 = vmatpush.bf16.msra.mxu0 %v1366
  %1750 = vmatpush.bf16.msra.mxu0 %v1362
  %1751 = vmatpush.bf16.msra.mxu0 %v1358
  %1752 = vmatmul.bf16.gmra.mxu0 %v357
  %v1753 = vpop.f32.mrf.mxu0
  %v1754 = vadd.f32 %v1740, %v1753
  %v1755 = vpop.f32.mrf.mxu0
  %v1756 = vadd.f32 %v1742, %v1755
  %1757 = vdwg.mxu0
  %1758 = vmatpush.bf16.msra.mxu0 %v1163
  %1759 = vmatpush.bf16.msra.mxu0 %v1159
  %1760 = vmatpush.bf16.msra.mxu0 %v1155
  %1761 = vmatpush.bf16.msra.mxu0 %v1151
  %1762 = vmatpush.bf16.msra.mxu0 %v1147
  %1763 = vmatpush.bf16.msra.mxu0 %v1143
  %1764 = vmatpush.bf16.msra.mxu0 %v1139
  %1765 = vmatpush.bf16.msra.mxu0 %v1135
  %1766 = vmatmul.bf16.gmra.mxu0 %v350
  %v1767 = vpop.f32.mrf.mxu0
  %v1768 = vadd.f32 %v319, %v1767
  %v1769 = vpop.f32.mrf.mxu0
  %v1770 = vadd.f32 %v323, %v1769
  %1771 = vdwg.mxu0
  %1772 = vmatpush.bf16.msra.mxu0 %v1195
  %1773 = vmatpush.bf16.msra.mxu0 %v1191
  %1774 = vmatpush.bf16.msra.mxu0 %v1187
  %1775 = vmatpush.bf16.msra.mxu0 %v1183
  %1776 = vmatpush.bf16.msra.mxu0 %v1179
  %1777 = vmatpush.bf16.msra.mxu0 %v1175
  %1778 = vmatpush.bf16.msra.mxu0 %v1171
  %1779 = vmatpush.bf16.msra.mxu0 %v1167
  %1780 = vmatmul.bf16.gmra.mxu0 %v351
  %v1781 = vpop.f32.mrf.mxu0
  %v1782 = vadd.f32 %v1768, %v1781
  %v1783 = vpop.f32.mrf.mxu0
  %v1784 = vadd.f32 %v1770, %v1783
  %1785 = vdwg.mxu0
  %1786 = vmatpush.bf16.msra.mxu0 %v1227
  %1787 = vmatpush.bf16.msra.mxu0 %v1223
  %1788 = vmatpush.bf16.msra.mxu0 %v1219
  %1789 = vmatpush.bf16.msra.mxu0 %v1215
  %1790 = vmatpush.bf16.msra.mxu0 %v1211
  %1791 = vmatpush.bf16.msra.mxu0 %v1207
  %1792 = vmatpush.bf16.msra.mxu0 %v1203
  %1793 = vmatpush.bf16.msra.mxu0 %v1199
  %1794 = vmatmul.bf16.gmra.mxu0 %v352
  %v1795 = vpop.f32.mrf.mxu0
  %v1796 = vadd.f32 %v1782, %v1795
  %v1797 = vpop.f32.mrf.mxu0
  %v1798 = vadd.f32 %v1784, %v1797
  %1799 = vdwg.mxu0
  %1800 = vmatpush.bf16.msra.mxu0 %v1259
  %1801 = vmatpush.bf16.msra.mxu0 %v1255
  %1802 = vmatpush.bf16.msra.mxu0 %v1251
  %1803 = vmatpush.bf16.msra.mxu0 %v1247
  %1804 = vmatpush.bf16.msra.mxu0 %v1243
  %1805 = vmatpush.bf16.msra.mxu0 %v1239
  %1806 = vmatpush.bf16.msra.mxu0 %v1235
  %1807 = vmatpush.bf16.msra.mxu0 %v1231
  %1808 = vmatmul.bf16.gmra.mxu0 %v353
  %v1809 = vpop.f32.mrf.mxu0
  %v1810 = vadd.f32 %v1796, %v1809
  %v1811 = vpop.f32.mrf.mxu0
  %v1812 = vadd.f32 %v1798, %v1811
  %1813 = vdwg.mxu0
  %1814 = vmatpush.bf16.msra.mxu0 %v1291
  %1815 = vmatpush.bf16.msra.mxu0 %v1287
  %1816 = vmatpush.bf16.msra.mxu0 %v1283
  %1817 = vmatpush.bf16.msra.mxu0 %v1279
  %1818 = vmatpush.bf16.msra.mxu0 %v1275
  %1819 = vmatpush.bf16.msra.mxu0 %v1271
  %1820 = vmatpush.bf16.msra.mxu0 %v1267
  %1821 = vmatpush.bf16.msra.mxu0 %v1263
  %1822 = vmatmul.bf16.gmra.mxu0 %v354
  %v1823 = vpop.f32.mrf.mxu0
  %v1824 = vadd.f32 %v1810, %v1823
  %v1825 = vpop.f32.mrf.mxu0
  %v1826 = vadd.f32 %v1812, %v1825
  %1827 = vdwg.mxu0
  %1828 = vmatpush.bf16.msra.mxu0 %v1323
  %1829 = vmatpush.bf16.msra.mxu0 %v1319
  %1830 = vmatpush.bf16.msra.mxu0 %v1315
  %1831 = vmatpush.bf16.msra.mxu0 %v1311
  %1832 = vmatpush.bf16.msra.mxu0 %v1307
  %1833 = vmatpush.bf16.msra.mxu0 %v1303
  %1834 = vmatpush.bf16.msra.mxu0 %v1299
  %1835 = vmatpush.bf16.msra.mxu0 %v1295
  %1836 = vmatmul.bf16.gmra.mxu0 %v355
  %v1837 = vpop.f32.mrf.mxu0
  %v1838 = vadd.f32 %v1824, %v1837
  %v1839 = vpop.f32.mrf.mxu0
  %v1840 = vadd.f32 %v1826, %v1839
  %1841 = vdwg.mxu0
  %1842 = vmatpush.bf16.msra.mxu0 %v1355
  %1843 = vmatpush.bf16.msra.mxu0 %v1351
  %1844 = vmatpush.bf16.msra.mxu0 %v1347
  %1845 = vmatpush.bf16.msra.mxu0 %v1343
  %1846 = vmatpush.bf16.msra.mxu0 %v1339
  %1847 = vmatpush.bf16.msra.mxu0 %v1335
  %1848 = vmatpush.bf16.msra.mxu0 %v1331
  %1849 = vmatpush.bf16.msra.mxu0 %v1327
  %1850 = vmatmul.bf16.gmra.mxu0 %v356
  %v1851 = vpop.f32.mrf.mxu0
  %v1852 = vadd.f32 %v1838, %v1851
  %v1853 = vpop.f32.mrf.mxu0
  %v1854 = vadd.f32 %v1840, %v1853
  %1855 = vdwg.mxu0
  %1856 = vmatpush.bf16.msra.mxu0 %v1387
  %1857 = vmatpush.bf16.msra.mxu0 %v1383
  %1858 = vmatpush.bf16.msra.mxu0 %v1379
  %1859 = vmatpush.bf16.msra.mxu0 %v1375
  %1860 = vmatpush.bf16.msra.mxu0 %v1371
  %1861 = vmatpush.bf16.msra.mxu0 %v1367
  %1862 = vmatpush.bf16.msra.mxu0 %v1363
  %1863 = vmatpush.bf16.msra.mxu0 %v1359
  %1864 = vmatmul.bf16.gmra.mxu0 %v357
  %v1865 = vpop.f32.mrf.mxu0
  %v1866 = vadd.f32 %v1852, %v1865
  %v1867 = vpop.f32.mrf.mxu0
  %v1868 = vadd.f32 %v1854, %v1867
  %1869 = vdwg.mxu0
  %1870 = vmatpush.bf16.msra.mxu0 %v1164
  %1871 = vmatpush.bf16.msra.mxu0 %v1160
  %1872 = vmatpush.bf16.msra.mxu0 %v1156
  %1873 = vmatpush.bf16.msra.mxu0 %v1152
  %1874 = vmatpush.bf16.msra.mxu0 %v1148
  %1875 = vmatpush.bf16.msra.mxu0 %v1144
  %1876 = vmatpush.bf16.msra.mxu0 %v1140
  %1877 = vmatpush.bf16.msra.mxu0 %v1136
  %1878 = vmatmul.bf16.gmra.mxu0 %v350
  %v1879 = vpop.f32.mrf.mxu0
  %v1880 = vadd.f32 %v320, %v1879
  %v1881 = vpop.f32.mrf.mxu0
  %v1882 = vadd.f32 %v324, %v1881
  %1883 = vdwg.mxu0
  %1884 = vmatpush.bf16.msra.mxu0 %v1196
  %1885 = vmatpush.bf16.msra.mxu0 %v1192
  %1886 = vmatpush.bf16.msra.mxu0 %v1188
  %1887 = vmatpush.bf16.msra.mxu0 %v1184
  %1888 = vmatpush.bf16.msra.mxu0 %v1180
  %1889 = vmatpush.bf16.msra.mxu0 %v1176
  %1890 = vmatpush.bf16.msra.mxu0 %v1172
  %1891 = vmatpush.bf16.msra.mxu0 %v1168
  %1892 = vmatmul.bf16.gmra.mxu0 %v351
  %v1893 = vpop.f32.mrf.mxu0
  %v1894 = vadd.f32 %v1880, %v1893
  %v1895 = vpop.f32.mrf.mxu0
  %v1896 = vadd.f32 %v1882, %v1895
  %1897 = vdwg.mxu0
  %1898 = vmatpush.bf16.msra.mxu0 %v1228
  %1899 = vmatpush.bf16.msra.mxu0 %v1224
  %1900 = vmatpush.bf16.msra.mxu0 %v1220
  %1901 = vmatpush.bf16.msra.mxu0 %v1216
  %1902 = vmatpush.bf16.msra.mxu0 %v1212
  %1903 = vmatpush.bf16.msra.mxu0 %v1208
  %1904 = vmatpush.bf16.msra.mxu0 %v1204
  %1905 = vmatpush.bf16.msra.mxu0 %v1200
  %1906 = vmatmul.bf16.gmra.mxu0 %v352
  %v1907 = vpop.f32.mrf.mxu0
  %v1908 = vadd.f32 %v1894, %v1907
  %v1909 = vpop.f32.mrf.mxu0
  %v1910 = vadd.f32 %v1896, %v1909
  %1911 = vdwg.mxu0
  %1912 = vmatpush.bf16.msra.mxu0 %v1260
  %1913 = vmatpush.bf16.msra.mxu0 %v1256
  %1914 = vmatpush.bf16.msra.mxu0 %v1252
  %1915 = vmatpush.bf16.msra.mxu0 %v1248
  %1916 = vmatpush.bf16.msra.mxu0 %v1244
  %1917 = vmatpush.bf16.msra.mxu0 %v1240
  %1918 = vmatpush.bf16.msra.mxu0 %v1236
  %1919 = vmatpush.bf16.msra.mxu0 %v1232
  %1920 = vmatmul.bf16.gmra.mxu0 %v353
  %v1921 = vpop.f32.mrf.mxu0
  %v1922 = vadd.f32 %v1908, %v1921
  %v1923 = vpop.f32.mrf.mxu0
  %v1924 = vadd.f32 %v1910, %v1923
  %1925 = vdwg.mxu0
  %1926 = vmatpush.bf16.msra.mxu0 %v1292
  %1927 = vmatpush.bf16.msra.mxu0 %v1288
  %1928 = vmatpush.bf16.msra.mxu0 %v1284
  %1929 = vmatpush.bf16.msra.mxu0 %v1280
  %1930 = vmatpush.bf16.msra.mxu0 %v1276
  %1931 = vmatpush.bf16.msra.mxu0 %v1272
  %1932 = vmatpush.bf16.msra.mxu0 %v1268
  %1933 = vmatpush.bf16.msra.mxu0 %v1264
  %1934 = vmatmul.bf16.gmra.mxu0 %v354
  %v1935 = vpop.f32.mrf.mxu0
  %v1936 = vadd.f32 %v1922, %v1935
  %v1937 = vpop.f32.mrf.mxu0
  %v1938 = vadd.f32 %v1924, %v1937
  %1939 = vdwg.mxu0
  %1940 = vmatpush.bf16.msra.mxu0 %v1324
  %1941 = vmatpush.bf16.msra.mxu0 %v1320
  %1942 = vmatpush.bf16.msra.mxu0 %v1316
  %1943 = vmatpush.bf16.msra.mxu0 %v1312
  %1944 = vmatpush.bf16.msra.mxu0 %v1308
  %1945 = vmatpush.bf16.msra.mxu0 %v1304
  %1946 = vmatpush.bf16.msra.mxu0 %v1300
  %1947 = vmatpush.bf16.msra.mxu0 %v1296
  %1948 = vmatmul.bf16.gmra.mxu0 %v355
  %v1949 = vpop.f32.mrf.mxu0
  %v1950 = vadd.f32 %v1936, %v1949
  %v1951 = vpop.f32.mrf.mxu0
  %v1952 = vadd.f32 %v1938, %v1951
  %1953 = vdwg.mxu0
  %1954 = vmatpush.bf16.msra.mxu0 %v1356
  %1955 = vmatpush.bf16.msra.mxu0 %v1352
  %1956 = vmatpush.bf16.msra.mxu0 %v1348
  %1957 = vmatpush.bf16.msra.mxu0 %v1344
  %1958 = vmatpush.bf16.msra.mxu0 %v1340
  %1959 = vmatpush.bf16.msra.mxu0 %v1336
  %1960 = vmatpush.bf16.msra.mxu0 %v1332
  %1961 = vmatpush.bf16.msra.mxu0 %v1328
  %1962 = vmatmul.bf16.gmra.mxu0 %v356
  %v1963 = vpop.f32.mrf.mxu0
  %v1964 = vadd.f32 %v1950, %v1963
  %v1965 = vpop.f32.mrf.mxu0
  %v1966 = vadd.f32 %v1952, %v1965
  %1967 = vdwg.mxu0
  %1968 = vmatpush.bf16.msra.mxu0 %v1388
  %1969 = vmatpush.bf16.msra.mxu0 %v1384
  %1970 = vmatpush.bf16.msra.mxu0 %v1380
  %1971 = vmatpush.bf16.msra.mxu0 %v1376
  %1972 = vmatpush.bf16.msra.mxu0 %v1372
  %1973 = vmatpush.bf16.msra.mxu0 %v1368
  %1974 = vmatpush.bf16.msra.mxu0 %v1364
  %1975 = vmatpush.bf16.msra.mxu0 %v1360
  %1976 = vmatmul.bf16.gmra.mxu0 %v357
  %v1977 = vpop.f32.mrf.mxu0
  %v1978 = vadd.f32 %v1964, %v1977
  %v1979 = vpop.f32.mrf.mxu0
  %v1980 = vadd.f32 %v1966, %v1979
  %1981 = vdwg.mxu0
  %1982 = vmatpush.bf16.msra.mxu0 %v1165
  %1983 = vmatpush.bf16.msra.mxu0 %v1161
  %1984 = vmatpush.bf16.msra.mxu0 %v1157
  %1985 = vmatpush.bf16.msra.mxu0 %v1153
  %1986 = vmatpush.bf16.msra.mxu0 %v1149
  %1987 = vmatpush.bf16.msra.mxu0 %v1145
  %1988 = vmatpush.bf16.msra.mxu0 %v1141
  %1989 = vmatpush.bf16.msra.mxu0 %v1137
  %1990 = vmatmul.bf16.gmra.mxu0 %v350
  %v1991 = vpop.f32.mrf.mxu0
  %v1992 = vadd.f32 %v321, %v1991
  %v1993 = vpop.f32.mrf.mxu0
  %v1994 = vadd.f32 %v325, %v1993
  %1995 = vdwg.mxu0
  %1996 = vmatpush.bf16.msra.mxu0 %v1197
  %1997 = vmatpush.bf16.msra.mxu0 %v1193
  %1998 = vmatpush.bf16.msra.mxu0 %v1189
  %1999 = vmatpush.bf16.msra.mxu0 %v1185
  %2000 = vmatpush.bf16.msra.mxu0 %v1181
  %2001 = vmatpush.bf16.msra.mxu0 %v1177
  %2002 = vmatpush.bf16.msra.mxu0 %v1173
  %2003 = vmatpush.bf16.msra.mxu0 %v1169
  %2004 = vmatmul.bf16.gmra.mxu0 %v351
  %v2005 = vpop.f32.mrf.mxu0
  %v2006 = vadd.f32 %v1992, %v2005
  %v2007 = vpop.f32.mrf.mxu0
  %v2008 = vadd.f32 %v1994, %v2007
  %2009 = vdwg.mxu0
  %2010 = vmatpush.bf16.msra.mxu0 %v1229
  %2011 = vmatpush.bf16.msra.mxu0 %v1225
  %2012 = vmatpush.bf16.msra.mxu0 %v1221
  %2013 = vmatpush.bf16.msra.mxu0 %v1217
  %2014 = vmatpush.bf16.msra.mxu0 %v1213
  %2015 = vmatpush.bf16.msra.mxu0 %v1209
  %2016 = vmatpush.bf16.msra.mxu0 %v1205
  %2017 = vmatpush.bf16.msra.mxu0 %v1201
  %2018 = vmatmul.bf16.gmra.mxu0 %v352
  %v2019 = vpop.f32.mrf.mxu0
  %v2020 = vadd.f32 %v2006, %v2019
  %v2021 = vpop.f32.mrf.mxu0
  %v2022 = vadd.f32 %v2008, %v2021
  %2023 = vdwg.mxu0
  %2024 = vmatpush.bf16.msra.mxu0 %v1261
  %2025 = vmatpush.bf16.msra.mxu0 %v1257
  %2026 = vmatpush.bf16.msra.mxu0 %v1253
  %2027 = vmatpush.bf16.msra.mxu0 %v1249
  %2028 = vmatpush.bf16.msra.mxu0 %v1245
  %2029 = vmatpush.bf16.msra.mxu0 %v1241
  %2030 = vmatpush.bf16.msra.mxu0 %v1237
  %2031 = vmatpush.bf16.msra.mxu0 %v1233
  %2032 = vmatmul.bf16.gmra.mxu0 %v353
  %v2033 = vpop.f32.mrf.mxu0
  %v2034 = vadd.f32 %v2020, %v2033
  %v2035 = vpop.f32.mrf.mxu0
  %v2036 = vadd.f32 %v2022, %v2035
  %2037 = vdwg.mxu0
  %2038 = vmatpush.bf16.msra.mxu0 %v1293
  %2039 = vmatpush.bf16.msra.mxu0 %v1289
  %2040 = vmatpush.bf16.msra.mxu0 %v1285
  %2041 = vmatpush.bf16.msra.mxu0 %v1281
  %2042 = vmatpush.bf16.msra.mxu0 %v1277
  %2043 = vmatpush.bf16.msra.mxu0 %v1273
  %2044 = vmatpush.bf16.msra.mxu0 %v1269
  %2045 = vmatpush.bf16.msra.mxu0 %v1265
  %2046 = vmatmul.bf16.gmra.mxu0 %v354
  %v2047 = vpop.f32.mrf.mxu0
  %v2048 = vadd.f32 %v2034, %v2047
  %v2049 = vpop.f32.mrf.mxu0
  %v2050 = vadd.f32 %v2036, %v2049
  %2051 = vdwg.mxu0
  %2052 = vmatpush.bf16.msra.mxu0 %v1325
  %2053 = vmatpush.bf16.msra.mxu0 %v1321
  %2054 = vmatpush.bf16.msra.mxu0 %v1317
  %2055 = vmatpush.bf16.msra.mxu0 %v1313
  %2056 = vmatpush.bf16.msra.mxu0 %v1309
  %2057 = vmatpush.bf16.msra.mxu0 %v1305
  %2058 = vmatpush.bf16.msra.mxu0 %v1301
  %2059 = vmatpush.bf16.msra.mxu0 %v1297
  %2060 = vmatmul.bf16.gmra.mxu0 %v355
  %v2061 = vpop.f32.mrf.mxu0
  %v2062 = vadd.f32 %v2048, %v2061
  %v2063 = vpop.f32.mrf.mxu0
  %v2064 = vadd.f32 %v2050, %v2063
  %2065 = vdwg.mxu0
  %2066 = vmatpush.bf16.msra.mxu0 %v1357
  %2067 = vmatpush.bf16.msra.mxu0 %v1353
  %2068 = vmatpush.bf16.msra.mxu0 %v1349
  %2069 = vmatpush.bf16.msra.mxu0 %v1345
  %2070 = vmatpush.bf16.msra.mxu0 %v1341
  %2071 = vmatpush.bf16.msra.mxu0 %v1337
  %2072 = vmatpush.bf16.msra.mxu0 %v1333
  %2073 = vmatpush.bf16.msra.mxu0 %v1329
  %2074 = vmatmul.bf16.gmra.mxu0 %v356
  %v2075 = vpop.f32.mrf.mxu0
  %v2076 = vadd.f32 %v2062, %v2075
  %v2077 = vpop.f32.mrf.mxu0
  %v2078 = vadd.f32 %v2064, %v2077
  %2079 = vdwg.mxu0
  %2080 = vmatpush.bf16.msra.mxu0 %v1389
  %2081 = vmatpush.bf16.msra.mxu0 %v1385
  %2082 = vmatpush.bf16.msra.mxu0 %v1381
  %2083 = vmatpush.bf16.msra.mxu0 %v1377
  %2084 = vmatpush.bf16.msra.mxu0 %v1373
  %2085 = vmatpush.bf16.msra.mxu0 %v1369
  %2086 = vmatpush.bf16.msra.mxu0 %v1365
  %2087 = vmatpush.bf16.msra.mxu0 %v1361
  %2088 = vmatmul.bf16.gmra.mxu0 %v357
  %v2089 = vpop.f32.mrf.mxu0
  %v2090 = vadd.f32 %v2076, %v2089
  %v2091 = vpop.f32.mrf.mxu0
  %v2092 = vadd.f32 %v2078, %v2091
  %2093 = vdwg.mxu0
  %v2094 = vld [vmem:[%s4] sm:$0xf]
  %v2096 = vperm.slane %v2094, 0
  %v2097 = vperm.slane %v2094, 1
  %v2098 = vperm.slane %v2094, 2
  %v2099 = vperm.slane %v2094, 3
  %v2104 = vadd.f32 %v1754, %v2096
  %v2105 = vadd.f32 %v1866, %v2097
  %v2106 = vadd.f32 %v1978, %v2098
  %v2107 = vadd.f32 %v2090, %v2099
  %v2108 = vadd.f32 %v1756, %v2096
  %v2109 = vadd.f32 %v1868, %v2097
  %v2110 = vadd.f32 %v1980, %v2098
  %v2111 = vadd.f32 %v2092, %v2099
  %v2112 = vmax.f32 %v2104, 0.0
  %v2113 = vmax.f32 %v2105, 0.0
  %v2114 = vmax.f32 %v2106, 0.0
  %v2115 = vmax.f32 %v2107, 0.0
  %v2116 = vmax.f32 %v2108, 0.0
  %v2117 = vmax.f32 %v2109, 0.0
  %v2118 = vmax.f32 %v2110, 0.0
  %v2119 = vmax.f32 %v2111, 0.0
  %v2120 = vpack.c.bf16 %v2116, %v2112
  %v2121 = vpack.c.bf16 %v2117, %v2113
  %v2122 = vpack.c.bf16 %v2118, %v2114
  %v2123 = vpack.c.bf16 %v2119, %v2115
  %v2124 = vld [vmem:[%s5] sm:$0xff]
  %v2125 = vld [vmem:[%s5 + $0x8] sm:$0xff]
  %v2126 = vld [vmem:[%s5 + $0x10] sm:$0xff]
  %v2127 = vld [vmem:[%s5 + $0x18] sm:$0xff]
  %v2128 = vld [vmem:[%s5 + $0x20] sm:$0xff]
  %v2129 = vld [vmem:[%s5 + $0x28] sm:$0xff]
  %v2130 = vld [vmem:[%s5 + $0x30] sm:$0xff]
  %v2131 = vld [vmem:[%s5 + $0x38] sm:$0xff]
  %v2132 = vld [vmem:[%s5 + $0x40] sm:$0xff]
  %v2133 = vld [vmem:[%s5 + $0x48] sm:$0xff]
  %v2134 = vld [vmem:[%s5 + $0x50] sm:$0xff]
  %v2135 = vld [vmem:[%s5 + $0x58] sm:$0xff]
  %v2136 = vld [vmem:[%s5 + $0x60] sm:$0xff]
  %v2137 = vld [vmem:[%s5 + $0x68] sm:$0xff]
  %v2138 = vld [vmem:[%s5 + $0x70] sm:$0xff]
  %v2139 = vld [vmem:[%s5 + $0x78] sm:$0xff]
  %v2140 = vld [vmem:[%s5 + $0x80] sm:$0xff]
  %v2141 = vld [vmem:[%s5 + $0x88] sm:$0xff]
  %v2142 = vld [vmem:[%s5 + $0x90] sm:$0xff]
  %v2143 = vld [vmem:[%s5 + $0x98] sm:$0xff]
  %v2144 = vld [vmem:[%s5 + $0xa0] sm:$0xff]
  %v2145 = vld [vmem:[%s5 + $0xa8] sm:$0xff]
  %v2146 = vld [vmem:[%s5 + $0xb0] sm:$0xff]
  %v2147 = vld [vmem:[%s5 + $0xb8] sm:$0xff]
  %v2148 = vld [vmem:[%s5 + $0xc0] sm:$0xff]
  %v2149 = vld [vmem:[%s5 + $0xc8] sm:$0xff]
  %v2150 = vld [vmem:[%s5 + $0xd0] sm:$0xff]
  %v2151 = vld [vmem:[%s5 + $0xd8] sm:$0xff]
  %v2152 = vld [vmem:[%s5 + $0xe0] sm:$0xff]
  %v2153 = vld [vmem:[%s5 + $0xe8] sm:$0xff]
  %v2154 = vld [vmem:[%s5 + $0xf0] sm:$0xff]
  %v2155 = vld [vmem:[%s5 + $0xf8] sm:$0xff]
  %v2156 = vld [vmem:[%s5 + $0x100] sm:$0xff]
  %v2157 = vld [vmem:[%s5 + $0x108] sm:$0xff]
  %v2158 = vld [vmem:[%s5 + $0x110] sm:$0xff]
  %v2159 = vld [vmem:[%s5 + $0x118] sm:$0xff]
  %v2160 = vld [vmem:[%s5 + $0x120] sm:$0xff]
  %v2161 = vld [vmem:[%s5 + $0x128] sm:$0xff]
  %v2162 = vld [vmem:[%s5 + $0x130] sm:$0xff]
  %v2163 = vld [vmem:[%s5 + $0x138] sm:$0xff]
  %v2164 = vld [vmem:[%s5 + $0x140] sm:$0xff]
  %v2165 = vld [vmem:[%s5 + $0x148] sm:$0xff]
  %v2166 = vld [vmem:[%s5 + $0x150] sm:$0xff]
  %v2167 = vld [vmem:[%s5 + $0x158] sm:$0xff]
  %v2168 = vld [vmem:[%s5 + $0x160] sm:$0xff]
  %v2169 = vld [vmem:[%s5 + $0x168] sm:$0xff]
  %v2170 = vld [vmem:[%s5 + $0x170] sm:$0xff]
  %v2171 = vld [vmem:[%s5 + $0x178] sm:$0xff]
  %v2172 = vld [vmem:[%s5 + $0x180] sm:$0xff]
  %v2173 = vld [vmem:[%s5 + $0x188] sm:$0xff]
  %v2174 = vld [vmem:[%s5 + $0x190] sm:$0xff]
  %v2175 = vld [vmem:[%s5 + $0x198] sm:$0xff]
  %v2176 = vld [vmem:[%s5 + $0x1a0] sm:$0xff]
  %v2177 = vld [vmem:[%s5 + $0x1a8] sm:$0xff]
  %v2178 = vld [vmem:[%s5 + $0x1b0] sm:$0xff]
  %v2179 = vld [vmem:[%s5 + $0x1b8] sm:$0xff]
  %v2180 = vld [vmem:[%s5 + $0x1c0] sm:$0xff]
  %v2181 = vld [vmem:[%s5 + $0x1c8] sm:$0xff]
  %v2182 = vld [vmem:[%s5 + $0x1d0] sm:$0xff]
  %v2183 = vld [vmem:[%s5 + $0x1d8] sm:$0xff]
  %v2184 = vld [vmem:[%s5 + $0x1e0] sm:$0xff]
  %v2185 = vld [vmem:[%s5 + $0x1e8] sm:$0xff]
  %v2186 = vld [vmem:[%s5 + $0x1f0] sm:$0xff]
  %v2187 = vld [vmem:[%s5 + $0x1f8] sm:$0xff]
  %v2188 = vld [vmem:[%s6] sm:$0x3]
  %v2190 = vperm.slane %v2188, 0
  %v2191 = vperm.slane %v2188, 1
  %v2258 = vunpack.c.l.b16 %v2124
  %v2259 = vunpack.c.h.b16 %v2124
  %v2260 = vunpack.c.l.b16 %v2125
  %v2261 = vunpack.c.h.b16 %v2125
  %v2262 = vunpack.c.l.b16 %v2126
  %v2263 = vunpack.c.h.b16 %v2126
  %v2264 = vunpack.c.l.b16 %v2127
  %v2265 = vunpack.c.h.b16 %v2127
  %v2266 = vunpack.c.l.b16 %v2128
  %v2267 = vunpack.c.h.b16 %v2128
  %v2268 = vunpack.c.l.b16 %v2129
  %v2269 = vunpack.c.h.b16 %v2129
  %v2270 = vunpack.c.l.b16 %v2130
  %v2271 = vunpack.c.h.b16 %v2130
  %v2272 = vunpack.c.l.b16 %v2131
  %v2273 = vunpack.c.h.b16 %v2131
  %v2274 = vunpack.c.l.b16 %v2132
  %v2275 = vunpack.c.h.b16 %v2132
  %v2276 = vunpack.c.l.b16 %v2133
  %v2277 = vunpack.c.h.b16 %v2133
  %v2278 = vunpack.c.l.b16 %v2134
  %v2279 = vunpack.c.h.b16 %v2134
  %v2280 = vunpack.c.l.b16 %v2135
  %v2281 = vunpack.c.h.b16 %v2135
  %v2282 = vunpack.c.l.b16 %v2136
  %v2283 = vunpack.c.h.b16 %v2136
  %v2284 = vunpack.c.l.b16 %v2137
  %v2285 = vunpack.c.h.b16 %v2137
  %v2286 = vunpack.c.l.b16 %v2138
  %v2287 = vunpack.c.h.b16 %v2138
  %v2288 = vunpack.c.l.b16 %v2139
  %v2289 = vunpack.c.h.b16 %v2139
  %v2290 = vunpack.c.l.b16 %v2140
  %v2291 = vunpack.c.h.b16 %v2140
  %v2292 = vunpack.c.l.b16 %v2141
  %v2293 = vunpack.c.h.b16 %v2141
  %v2294 = vunpack.c.l.b16 %v2142
  %v2295 = vunpack.c.h.b16 %v2142
  %v2296 = vunpack.c.l.b16 %v2143
  %v2297 = vunpack.c.h.b16 %v2143
  %v2298 = vunpack.c.l.b16 %v2144
  %v2299 = vunpack.c.h.b16 %v2144
  %v2300 = vunpack.c.l.b16 %v2145
  %v2301 = vunpack.c.h.b16 %v2145
  %v2302 = vunpack.c.l.b16 %v2146
  %v2303 = vunpack.c.h.b16 %v2146
  %v2304 = vunpack.c.l.b16 %v2147
  %v2305 = vunpack.c.h.b16 %v2147
  %v2306 = vunpack.c.l.b16 %v2148
  %v2307 = vunpack.c.h.b16 %v2148
  %v2308 = vunpack.c.l.b16 %v2149
  %v2309 = vunpack.c.h.b16 %v2149
  %v2310 = vunpack.c.l.b16 %v2150
  %v2311 = vunpack.c.h.b16 %v2150
  %v2312 = vunpack.c.l.b16 %v2151
  %v2313 = vunpack.c.h.b16 %v2151
  %v2314 = vunpack.c.l.b16 %v2152
  %v2315 = vunpack.c.h.b16 %v2152
  %v2316 = vunpack.c.l.b16 %v2153
  %v2317 = vunpack.c.h.b16 %v2153
  %v2318 = vunpack.c.l.b16 %v2154
  %v2319 = vunpack.c.h.b16 %v2154
  %v2320 = vunpack.c.l.b16 %v2155
  %v2321 = vunpack.c.h.b16 %v2155
  %v2322 = vunpack.c.l.b16 %v2156
  %v2323 = vunpack.c.h.b16 %v2156
  %v2324 = vunpack.c.l.b16 %v2157
  %v2325 = vunpack.c.h.b16 %v2157
  %v2326 = vunpack.c.l.b16 %v2158
  %v2327 = vunpack.c.h.b16 %v2158
  %v2328 = vunpack.c.l.b16 %v2159
  %v2329 = vunpack.c.h.b16 %v2159
  %v2330 = vunpack.c.l.b16 %v2160
  %v2331 = vunpack.c.h.b16 %v2160
  %v2332 = vunpack.c.l.b16 %v2161
  %v2333 = vunpack.c.h.b16 %v2161
  %v2334 = vunpack.c.l.b16 %v2162
  %v2335 = vunpack.c.h.b16 %v2162
  %v2336 = vunpack.c.l.b16 %v2163
  %v2337 = vunpack.c.h.b16 %v2163
  %v2338 = vunpack.c.l.b16 %v2164
  %v2339 = vunpack.c.h.b16 %v2164
  %v2340 = vunpack.c.l.b16 %v2165
  %v2341 = vunpack.c.h.b16 %v2165
  %v2342 = vunpack.c.l.b16 %v2166
  %v2343 = vunpack.c.h.b16 %v2166
  %v2344 = vunpack.c.l.b16 %v2167
  %v2345 = vunpack.c.h.b16 %v2167
  %v2346 = vunpack.c.l.b16 %v2168
  %v2347 = vunpack.c.h.b16 %v2168
  %v2348 = vunpack.c.l.b16 %v2169
  %v2349 = vunpack.c.h.b16 %v2169
  %v2350 = vunpack.c.l.b16 %v2170
  %v2351 = vunpack.c.h.b16 %v2170
  %v2352 = vunpack.c.l.b16 %v2171
  %v2353 = vunpack.c.h.b16 %v2171
  %v2354 = vunpack.c.l.b16 %v2172
  %v2355 = vunpack.c.h.b16 %v2172
  %v2356 = vunpack.c.l.b16 %v2173
  %v2357 = vunpack.c.h.b16 %v2173
  %v2358 = vunpack.c.l.b16 %v2174
  %v2359 = vunpack.c.h.b16 %v2174
  %v2360 = vunpack.c.l.b16 %v2175
  %v2361 = vunpack.c.h.b16 %v2175
  %v2362 = vunpack.c.l.b16 %v2176
  %v2363 = vunpack.c.h.b16 %v2176
  %v2364 = vunpack.c.l.b16 %v2177
  %v2365 = vunpack.c.h.b16 %v2177
  %v2366 = vunpack.c.l.b16 %v2178
  %v2367 = vunpack.c.h.b16 %v2178
  %v2368 = vunpack.c.l.b16 %v2179
  %v2369 = vunpack.c.h.b16 %v2179
  %v2370 = vunpack.c.l.b16 %v2180
  %v2371 = vunpack.c.h.b16 %v2180
  %v2372 = vunpack.c.l.b16 %v2181
  %v2373 = vunpack.c.h.b16 %v2181
  %v2374 = vunpack.c.l.b16 %v2182
  %v2375 = vunpack.c.h.b16 %v2182
  %v2376 = vunpack.c.l.b16 %v2183
  %v2377 = vunpack.c.h.b16 %v2183
  %v2378 = vunpack.c.l.b16 %v2184
  %v2379 = vunpack.c.h.b16 %v2184
  %v2380 = vunpack.c.l.b16 %v2185
  %v2381 = vunpack.c.h.b16 %v2185
  %v2382 = vunpack.c.l.b16 %v2186
  %v2383 = vunpack.c.h.b16 %v2186
  %v2384 = vunpack.c.l.b16 %v2187
  %v2385 = vunpack.c.h.b16 %v2187
  %v2386 = vpack.c.b16 %v2260, %v2258
  %v2387 = vpack.c.b16 %v2261, %v2259
  %v2388 = vpack.c.b16 %v2264, %v2262
  %v2389 = vpack.c.b16 %v2265, %v2263
  %v2390 = vpack.c.b16 %v2268, %v2266
  %v2391 = vpack.c.b16 %v2269, %v2267
  %v2392 = vpack.c.b16 %v2272, %v2270
  %v2393 = vpack.c.b16 %v2273, %v2271
  %v2394 = vpack.c.b16 %v2276, %v2274
  %v2395 = vpack.c.b16 %v2277, %v2275
  %v2396 = vpack.c.b16 %v2280, %v2278
  %v2397 = vpack.c.b16 %v2281, %v2279
  %v2398 = vpack.c.b16 %v2284, %v2282
  %v2399 = vpack.c.b16 %v2285, %v2283
  %v2400 = vpack.c.b16 %v2288, %v2286
  %v2401 = vpack.c.b16 %v2289, %v2287
  %v2402 = vpack.c.b16 %v2292, %v2290
  %v2403 = vpack.c.b16 %v2293, %v2291
  %v2404 = vpack.c.b16 %v2296, %v2294
  %v2405 = vpack.c.b16 %v2297, %v2295
  %v2406 = vpack.c.b16 %v2300, %v2298
  %v2407 = vpack.c.b16 %v2301, %v2299
  %v2408 = vpack.c.b16 %v2304, %v2302
  %v2409 = vpack.c.b16 %v2305, %v2303
  %v2410 = vpack.c.b16 %v2308, %v2306
  %v2411 = vpack.c.b16 %v2309, %v2307
  %v2412 = vpack.c.b16 %v2312, %v2310
  %v2413 = vpack.c.b16 %v2313, %v2311
  %v2414 = vpack.c.b16 %v2316, %v2314
  %v2415 = vpack.c.b16 %v2317, %v2315
  %v2416 = vpack.c.b16 %v2320, %v2318
  %v2417 = vpack.c.b16 %v2321, %v2319
  %v2418 = vpack.c.b16 %v2324, %v2322
  %v2419 = vpack.c.b16 %v2325, %v2323
  %v2420 = vpack.c.b16 %v2328, %v2326
  %v2421 = vpack.c.b16 %v2329, %v2327
  %v2422 = vpack.c.b16 %v2332, %v2330
  %v2423 = vpack.c.b16 %v2333, %v2331
  %v2424 = vpack.c.b16 %v2336, %v2334
  %v2425 = vpack.c.b16 %v2337, %v2335
  %v2426 = vpack.c.b16 %v2340, %v2338
  %v2427 = vpack.c.b16 %v2341, %v2339
  %v2428 = vpack.c.b16 %v2344, %v2342
  %v2429 = vpack.c.b16 %v2345, %v2343
  %v2430 = vpack.c.b16 %v2348, %v2346
  %v2431 = vpack.c.b16 %v2349, %v2347
  %v2432 = vpack.c.b16 %v2352, %v2350
  %v2433 = vpack.c.b16 %v2353, %v2351
  %v2434 = vpack.c.b16 %v2356, %v2354
  %v2435 = vpack.c.b16 %v2357, %v2355
  %v2436 = vpack.c.b16 %v2360, %v2358
  %v2437 = vpack.c.b16 %v2361, %v2359
  %v2438 = vpack.c.b16 %v2364, %v2362
  %v2439 = vpack.c.b16 %v2365, %v2363
  %v2440 = vpack.c.b16 %v2368, %v2366
  %v2441 = vpack.c.b16 %v2369, %v2367
  %v2442 = vpack.c.b16 %v2372, %v2370
  %v2443 = vpack.c.b16 %v2373, %v2371
  %v2444 = vpack.c.b16 %v2376, %v2374
  %v2445 = vpack.c.b16 %v2377, %v2375
  %v2446 = vpack.c.b16 %v2380, %v2378
  %v2447 = vpack.c.b16 %v2381, %v2379
  %v2448 = vpack.c.b16 %v2384, %v2382
  %v2449 = vpack.c.b16 %v2385, %v2383
  %2514 = vmatpush.bf16.msra.mxu0 %v2400
  %2515 = vmatpush.bf16.msra.mxu0 %v2398
  %2516 = vmatpush.bf16.msra.mxu0 %v2396
  %2517 = vmatpush.bf16.msra.mxu0 %v2394
  %2518 = vmatpush.bf16.msra.mxu0 %v2392
  %2519 = vmatpush.bf16.msra.mxu0 %v2390
  %2520 = vmatpush.bf16.msra.mxu0 %v2388
  %2521 = vmatpush.bf16.msra.mxu0 %v2386
  %2522 = vmatmul.bf16.gmra.mxu0 %v2120
  %v2523 = vpop.f32.mrf.mxu0
  %v2524 = vadd.f32 %v2190, %v2523
  %v2525 = vpop.f32.mrf.mxu0
  %v2526 = vadd.f32 %v2190, %v2525
  %2527 = vdwg.mxu0
  %2528 = vmatpush.bf16.msra.mxu0 %v2416
  %2529 = vmatpush.bf16.msra.mxu0 %v2414
  %2530 = vmatpush.bf16.msra.mxu0 %v2412
  %2531 = vmatpush.bf16.msra.mxu0 %v2410
  %2532 = vmatpush.bf16.msra.mxu0 %v2408
  %2533 = vmatpush.bf16.msra.mxu0 %v2406
  %2534 = vmatpush.bf16.msra.mxu0 %v2404
  %2535 = vmatpush.bf16.msra.mxu0 %v2402
  %2536 = vmatmul.bf16.gmra.mxu0 %v2121
  %v2537 = vpop.f32.mrf.mxu0
  %v2538 = vadd.f32 %v2524, %v2537
  %v2539 = vpop.f32.mrf.mxu0
  %v2540 = vadd.f32 %v2526, %v2539
  %2541 = vdwg.mxu0
  %2542 = vmatpush.bf16.msra.mxu0 %v2432
  %2543 = vmatpush.bf16.msra.mxu0 %v2430
  %2544 = vmatpush.bf16.msra.mxu0 %v2428
  %2545 = vmatpush.bf16.msra.mxu0 %v2426
  %2546 = vmatpush.bf16.msra.mxu0 %v2424
  %2547 = vmatpush.bf16.msra.mxu0 %v2422
  %2548 = vmatpush.bf16.msra.mxu0 %v2420
  %2549 = vmatpush.bf16.msra.mxu0 %v2418
  %2550 = vmatmul.bf16.gmra.mxu0 %v2122
  %v2551 = vpop.f32.mrf.mxu0
  %v2552 = vadd.f32 %v2538, %v2551
  %v2553 = vpop.f32.mrf.mxu0
  %v2554 = vadd.f32 %v2540, %v2553
  %2555 = vdwg.mxu0
  %2556 = vmatpush.bf16.msra.mxu0 %v2448
  %2557 = vmatpush.bf16.msra.mxu0 %v2446
  %2558 = vmatpush.bf16.msra.mxu0 %v2444
  %2559 = vmatpush.bf16.msra.mxu0 %v2442
  %2560 = vmatpush.bf16.msra.mxu0 %v2440
  %2561 = vmatpush.bf16.msra.mxu0 %v2438
  %2562 = vmatpush.bf16.msra.mxu0 %v2436
  %2563 = vmatpush.bf16.msra.mxu0 %v2434
  %2564 = vmatmul.bf16.gmra.mxu0 %v2123
  %v2565 = vpop.f32.mrf.mxu0
  %v2566 = vadd.f32 %v2552, %v2565
  %v2567 = vpop.f32.mrf.mxu0
  %v2568 = vadd.f32 %v2554, %v2567
  %2569 = vdwg.mxu0
  %2570 = vmatpush.bf16.msra.mxu0 %v2401
  %2571 = vmatpush.bf16.msra.mxu0 %v2399
  %2572 = vmatpush.bf16.msra.mxu0 %v2397
  %2573 = vmatpush.bf16.msra.mxu0 %v2395
  %2574 = vmatpush.bf16.msra.mxu0 %v2393
  %2575 = vmatpush.bf16.msra.mxu0 %v2391
  %2576 = vmatpush.bf16.msra.mxu0 %v2389
  %2577 = vmatpush.bf16.msra.mxu0 %v2387
  %2578 = vmatmul.bf16.gmra.mxu0 %v2120
  %v2579 = vpop.f32.mrf.mxu0
  %v2580 = vadd.f32 %v2191, %v2579
  %v2581 = vpop.f32.mrf.mxu0
  %v2582 = vadd.f32 %v2191, %v2581
  %2583 = vdwg.mxu0
  %2584 = vmatpush.bf16.msra.mxu0 %v2417
  %2585 = vmatpush.bf16.msra.mxu0 %v2415
  %2586 = vmatpush.bf16.msra.mxu0 %v2413
  %2587 = vmatpush.bf16.msra.mxu0 %v2411
  %2588 = vmatpush.bf16.msra.mxu0 %v2409
  %2589 = vmatpush.bf16.msra.mxu0 %v2407
  %2590 = vmatpush.bf16.msra.mxu0 %v2405
  %2591 = vmatpush.bf16.msra.mxu0 %v2403
  %2592 = vmatmul.bf16.gmra.mxu0 %v2121
  %v2593 = vpop.f32.mrf.mxu0
  %v2594 = vadd.f32 %v2580, %v2593
  %v2595 = vpop.f32.mrf.mxu0
  %v2596 = vadd.f32 %v2582, %v2595
  %2597 = vdwg.mxu0
  %2598 = vmatpush.bf16.msra.mxu0 %v2433
  %2599 = vmatpush.bf16.msra.mxu0 %v2431
  %2600 = vmatpush.bf16.msra.mxu0 %v2429
  %2601 = vmatpush.bf16.msra.mxu0 %v2427
  %2602 = vmatpush.bf16.msra.mxu0 %v2425
  %2603 = vmatpush.bf16.msra.mxu0 %v2423
  %2604 = vmatpush.bf16.msra.mxu0 %v2421
  %2605 = vmatpush.bf16.msra.mxu0 %v2419
  %2606 = vmatmul.bf16.gmra.mxu0 %v2122
  %v2607 = vpop.f32.mrf.mxu0
  %v2608 = vadd.f32 %v2594, %v2607
  %v2609 = vpop.f32.mrf.mxu0
  %v2610 = vadd.f32 %v2596, %v2609
  %2611 = vdwg.mxu0
  %2612 = vmatpush.bf16.msra.mxu0 %v2449
  %2613 = vmatpush.bf16.msra.mxu0 %v2447
  %2614 = vmatpush.bf16.msra.mxu0 %v2445
  %2615 = vmatpush.bf16.msra.mxu0 %v2443
  %2616 = vmatpush.bf16.msra.mxu0 %v2441
  %2617 = vmatpush.bf16.msra.mxu0 %v2439
  %2618 = vmatpush.bf16.msra.mxu0 %v2437
  %2619 = vmatpush.bf16.msra.mxu0 %v2435
  %2620 = vmatmul.bf16.gmra.mxu0 %v2123
  %v2621 = vpop.f32.mrf.mxu0
  %v2622 = vadd.f32 %v2608, %v2621
  %v2623 = vpop.f32.mrf.mxu0
  %v2624 = vadd.f32 %v2610, %v2623
  %2625 = vdwg.mxu0
  %v2626 = vmax.f32 %v2566, 0.0
  %v2627 = vmax.f32 %v2622, 0.0
  %v2628 = vmax.f32 %v2568, 0.0
  %v2629 = vmax.f32 %v2624, 0.0
  %v2630 = vpack.c.bf16 %v2628, %v2626
  %v2631 = vpack.c.bf16 %v2629, %v2627
  %v2632 = vld [vmem:[%s7] sm:$0xf]
  %v2633 = vld [vmem:[%s7 + $0x4] sm:$0xf]
  %v2634 = vld [vmem:[%s7 + $0x8] sm:$0xf]
  %v2635 = vld [vmem:[%s7 + $0xc] sm:$0xf]
  %v2636 = vld [vmem:[%s7 + $0x10] sm:$0xf]
  %v2637 = vld [vmem:[%s7 + $0x14] sm:$0xf]
  %v2638 = vld [vmem:[%s7 + $0x18] sm:$0xf]
  %v2639 = vld [vmem:[%s7 + $0x1c] sm:$0xf]
  %v2640 = vld [vmem:[%s7 + $0x20] sm:$0xf]
  %v2641 = vld [vmem:[%s7 + $0x24] sm:$0xf]
  %v2642 = vld [vmem:[%s7 + $0x28] sm:$0xf]
  %v2643 = vld [vmem:[%s7 + $0x2c] sm:$0xf]
  %v2644 = vld [vmem:[%s7 + $0x30] sm:$0xf]
  %v2645 = vld [vmem:[%s7 + $0x34] sm:$0xf]
  %v2646 = vld [vmem:[%s7 + $0x38] sm:$0xf]
  %v2647 = vld [vmem:[%s7 + $0x3c] sm:$0xf]
  %v2648 = vld [vmem:[%s7 + $0x40] sm:$0xf]
  %v2649 = vld [vmem:[%s7 + $0x44] sm:$0xf]
  %v2650 = vld [vmem:[%s7 + $0x48] sm:$0xf]
  %v2651 = vld [vmem:[%s7 + $0x4c] sm:$0xf]
  %v2652 = vld [vmem:[%s7 + $0x50] sm:$0xf]
  %v2653 = vld [vmem:[%s7 + $0x54] sm:$0xf]
  %v2654 = vld [vmem:[%s7 + $0x58] sm:$0xf]
  %v2655 = vld [vmem:[%s7 + $0x5c] sm:$0xf]
  %v2656 = vld [vmem:[%s7 + $0x60] sm:$0xf]
  %v2657 = vld [vmem:[%s7 + $0x64] sm:$0xf]
  %v2658 = vld [vmem:[%s7 + $0x68] sm:$0xf]
  %v2659 = vld [vmem:[%s7 + $0x6c] sm:$0xf]
  %v2660 = vld [vmem:[%s7 + $0x70] sm:$0xf]
  %v2661 = vld [vmem:[%s7 + $0x74] sm:$0xf]
  %v2662 = vld [vmem:[%s7 + $0x78] sm:$0xf]
  %v2663 = vld [vmem:[%s7 + $0x7c] sm:$0xf]
  %v2664 = vld [vmem:[%s8] sm:$0x1]
  %v2666 = vperm.slane %v2664, 0
  %v2700 = vunpack.c.l.b16 %v2632
  %v2701 = vunpack.c.l.b16 %v2633
  %v2702 = vunpack.c.l.b16 %v2634
  %v2703 = vunpack.c.l.b16 %v2635
  %v2704 = vunpack.c.l.b16 %v2636
  %v2705 = vunpack.c.l.b16 %v2637
  %v2706 = vunpack.c.l.b16 %v2638
  %v2707 = vunpack.c.l.b16 %v2639
  %v2708 = vunpack.c.l.b16 %v2640
  %v2709 = vunpack.c.l.b16 %v2641
  %v2710 = vunpack.c.l.b16 %v2642
  %v2711 = vunpack.c.l.b16 %v2643
  %v2712 = vunpack.c.l.b16 %v2644
  %v2713 = vunpack.c.l.b16 %v2645
  %v2714 = vunpack.c.l.b16 %v2646
  %v2715 = vunpack.c.l.b16 %v2647
  %v2716 = vunpack.c.l.b16 %v2648
  %v2717 = vunpack.c.l.b16 %v2649
  %v2718 = vunpack.c.l.b16 %v2650
  %v2719 = vunpack.c.l.b16 %v2651
  %v2720 = vunpack.c.l.b16 %v2652
  %v2721 = vunpack.c.l.b16 %v2653
  %v2722 = vunpack.c.l.b16 %v2654
  %v2723 = vunpack.c.l.b16 %v2655
  %v2724 = vunpack.c.l.b16 %v2656
  %v2725 = vunpack.c.l.b16 %v2657
  %v2726 = vunpack.c.l.b16 %v2658
  %v2727 = vunpack.c.l.b16 %v2659
  %v2728 = vunpack.c.l.b16 %v2660
  %v2729 = vunpack.c.l.b16 %v2661
  %v2730 = vunpack.c.l.b16 %v2662
  %v2731 = vunpack.c.l.b16 %v2663
  %v2732 = vpack.c.b16 %v2701, %v2700
  %v2733 = vpack.c.b16 %v2703, %v2702
  %v2734 = vpack.c.b16 %v2705, %v2704
  %v2735 = vpack.c.b16 %v2707, %v2706
  %v2736 = vpack.c.b16 %v2709, %v2708
  %v2737 = vpack.c.b16 %v2711, %v2710
  %v2738 = vpack.c.b16 %v2713, %v2712
  %v2739 = vpack.c.b16 %v2715, %v2714
  %v2740 = vpack.c.b16 %v2717, %v2716
  %v2741 = vpack.c.b16 %v2719, %v2718
  %v2742 = vpack.c.b16 %v2721, %v2720
  %v2743 = vpack.c.b16 %v2723, %v2722
  %v2744 = vpack.c.b16 %v2725, %v2724
  %v2745 = vpack.c.b16 %v2727, %v2726
  %v2746 = vpack.c.b16 %v2729, %v2728
  %v2747 = vpack.c.b16 %v2731, %v2730
  %2764 = vmatpush.bf16.msra.mxu0 %v2739
  %2765 = vmatpush.bf16.msra.mxu0 %v2738
  %2766 = vmatpush.bf16.msra.mxu0 %v2737
  %2767 = vmatpush.bf16.msra.mxu0 %v2736
  %2768 = vmatpush.bf16.msra.mxu0 %v2735
  %2769 = vmatpush.bf16.msra.mxu0 %v2734
  %2770 = vmatpush.bf16.msra.mxu0 %v2733
  %2771 = vmatpush.bf16.msra.mxu0 %v2732
  %2772 = vmatmul.bf16.gmra.mxu0 %v2630
  %v2773 = vpop.f32.mrf.mxu0
  %v2774 = vadd.f32 %v2666, %v2773
  %v2775 = vpop.f32.mrf.mxu0
  %v2776 = vadd.f32 %v2666, %v2775
  %2777 = vdwg.mxu0
  %2778 = vmatpush.bf16.msra.mxu0 %v2747
  %2779 = vmatpush.bf16.msra.mxu0 %v2746
  %2780 = vmatpush.bf16.msra.mxu0 %v2745
  %2781 = vmatpush.bf16.msra.mxu0 %v2744
  %2782 = vmatpush.bf16.msra.mxu0 %v2743
  %2783 = vmatpush.bf16.msra.mxu0 %v2742
  %2784 = vmatpush.bf16.msra.mxu0 %v2741
  %2785 = vmatpush.bf16.msra.mxu0 %v2740
  %2786 = vmatmul.bf16.gmra.mxu0 %v2631
  %v2787 = vpop.f32.mrf.mxu0
  %v2788 = vadd.f32 %v2774, %v2787
  %v2789 = vpop.f32.mrf.mxu0
  %v2790 = vadd.f32 %v2776, %v2789
  %2791 = vdwg.mxu0
  %2792 = vst [vmem:[%s9] sm:$0xff] %v2788
  %2793 = vst [vmem:[%s9 + $0x8] sm:$0xff] %v2790
  // Predicated region
  $region38: #{hierarchical_category_forward.1} parent=0 // pred_check
    _
  $region39: #{hierarchical_category_forward.1} parent=0 // pred_check_branch
    %2795 = sbr.rel (0) target = $region41
  $region40: #{hierarchical_category_forward.1} parent=0 // pred_region
    _
  $region41: #{hierarchical_category_forward.1} parent=0 // pred_fallthru
    _
  // Predicated region
  $region42: #{hierarchical_category_forward.1} parent=0 // pred_check
    _
  $region43: #{hierarchical_category_forward.1} parent=0 // pred_check_branch
    %2797 = sbr.rel (0) target = $region45
  $region44: #{hierarchical_category_forward.1} parent=0 // pred_region
    _
  $region45: #{hierarchical_category_forward.1} parent=0 // pred_fallthru
    _

</llo_original>
